<compile_context>
chip_gen: v7x
topology: tpu7x:2x2x1
jax: 0.10.0
libtpu: 0.0.40
codegen_flags: <defaults>
</compile_context>

<pallas_src>
import jax
import jax.numpy as jnp
from jax.experimental import pallas as pl
from jax.experimental.pallas import tpu as pltpu

_LANE = 128


def rpn_kernel(p_ref, wc_ref, bc_ref, wh_ref, bh_ref, out_ref):
    # p_ref:   (TM, Kp)    bf16 lane-dense im2col patches for this row tile
    # wc_ref:  (Kp, Cp)    bf16 zero-padded 3x3 conv weight (tap-major rows)
    # bc_ref:  (1, Cp)     f32  zero-padded conv bias
    # wh_ref:  (Cp, NPAD)  bf16 fused cls|reg head weight, zero-padded
    # bh_ref:  (1, NPAD)   f32  fused cls|reg head bias, zero-padded
    # out_ref: (TM, NPAD)  bf16 lane-dense combined output tile
    feat = jnp.maximum(
        jnp.dot(p_ref[...], wc_ref[...], preferred_element_type=jnp.float32)
        + bc_ref[...], 0.0)                                    # (TM, Cp) f32
    out = jnp.dot(feat.astype(wh_ref.dtype), wh_ref[...],
                  preferred_element_type=jnp.float32) + bh_ref[...]
    out_ref[...] = out.astype(out_ref.dtype)


def _round_up(x, m):
    return ((x + m - 1) // m) * m


def _pick_vmem_limit_bytes():
    """~100 MiB scoped limit on 128-MiB chips (v5e/v6e), ~56 MiB on v7x."""
    phys = 64 * 1024 * 1024                       # conservative (v7x per-TC)
    try:
        phys = int(pltpu.get_tpu_info().vmem_capacity_bytes)
    except Exception:
        pass
    return int(max(32 * 1024 * 1024,
                   min(phys - 8 * 1024 * 1024, 100 * 1024 * 1024)))


def _pick_row_tile(hw, batch, kp, npad, vmem_limit_bytes):
    """Largest row tile whose double-buffered in+out tiles fit ~1/3 of the
    scoped VMEM budget (weights are single-buffered and small)."""
    bytes_per_row = 2 * 2 * kp + 2 * 2 * npad     # bf16 in + bf16 out, x2 bufs
    tm = (vmem_limit_bytes // 3) // bytes_per_row
    tm = int(max(128, min(1024, (tm // 128) * 128)))
    hw8 = _round_up(hw, 8)
    if tm >= hw8:
        # Whole image fits in one tile; with batch==1 still split into two row
        # tiles so a 2-TensorCore chip (v7x) has parallel grid work.
        tm = hw8 if batch > 1 else max(8, _round_up(pl.cdiv(hw8, 2), 8))
    return tm


def _build_rpn_call(B, R, TM, Kp, Cp, NPAD, hw_pad, vmem_limit,
                    single_buffer_weights):
    def _wspec(shape):
        if single_buffer_weights:
            # Constant index_map across the grid -> one VMEM copy suffices.
            return pl.BlockSpec(shape, lambda b, r: (0, 0),
                                pipeline_mode=pl.Buffered(1))
        return pl.BlockSpec(shape, lambda b, r: (0, 0))

    grid_spec = pltpu.PrefetchScalarGridSpec(
        num_scalar_prefetch=0,
        grid=(B, R),
        in_specs=[
            pl.BlockSpec((pl.Squeezed(), TM, Kp), lambda b, r: (b, r, 0)),
            _wspec((Kp, Cp)),
            _wspec((1, Cp)),
            _wspec((Cp, NPAD)),
            _wspec((1, NPAD)),
        ],
        out_specs=pl.BlockSpec((pl.Squeezed(), TM, NPAD),
                               lambda b, r: (b, r, 0)),
    )
    return pl.pallas_call(
        rpn_kernel,
        out_shape=jax.ShapeDtypeStruct((B, hw_pad, NPAD), jnp.bfloat16),
        grid_spec=grid_spec,
        compiler_params=pltpu.CompilerParams(
            dimension_semantics=("parallel", "parallel"),
            vmem_limit_bytes=vmem_limit),
    )


def rpn_forward(x_nchw, params):
    """x_nchw: (B, Cin, H, W) float32.  Returns (cls NCHW, reg NCHW)."""
    wc, bc, wcls, bcls, wreg, breg = params
    B, Cin, H, W = x_nchw.shape
    Cmid = wc.shape[-1]
    n_cls = wcls.shape[-1]
    n_reg = wreg.shape[-1]
    n_out = n_cls + n_reg
    HW = H * W

    K = 9 * Cin
    Kp = _round_up(K, _LANE)           # lane-dense matmul K
    Cp = _round_up(Cmid, _LANE)        # lane-dense matmul N (conv out)
    NPAD = _round_up(n_out, _LANE)     # lane-dense combined head output width

    vmem_limit = _pick_vmem_limit_bytes()
    TM = _pick_row_tile(HW, B, Kp, NPAD, vmem_limit)
    hw_pad = _round_up(HW, TM)
    R = hw_pad // TM

    # Wrapper-side im2col (Cin is lane-sparse): lane-dense (B, hw_pad, Kp)
    # bf16 patch tensor; tap order dy-major / dx-minor / Cin-minor matches
    # wc.reshape(9*Cin, Cmid).
    x = jnp.transpose(x_nchw, (0, 2, 3, 1)).astype(jnp.bfloat16)     # NHWC
    x_halo = jnp.pad(x, ((0, 0), (1, 1), (1, 1), (0, 0)))
    taps = [x_halo[:, dy:dy + H, dx:dx + W, :]
            for dy in range(3) for dx in range(3)]
    patches = jnp.concatenate(taps, axis=-1).reshape(B, HW, K)
    patches = jnp.pad(patches, ((0, 0), (0, hw_pad - HW), (0, Kp - K)))

    # Zero-padded weights / biases (padded rows/cols contribute exactly 0,
    # and the padded output columns are sliced off below).
    wc_pad = jnp.zeros((Kp, Cp), jnp.float32)
    wc_pad = wc_pad.at[:K, :Cmid].set(wc.reshape(K, Cmid)).astype(jnp.bfloat16)
    bc_pad = jnp.zeros((1, Cp), jnp.float32).at[:, :Cmid].set(bc)
    wh = jnp.zeros((Cp, NPAD), jnp.float32)
    wh = wh.at[:Cmid, :n_cls].set(wcls).at[:Cmid, n_cls:n_out].set(wreg)
    wh = wh.astype(jnp.bfloat16)
    bh = jnp.zeros((1, NPAD), jnp.float32)
    bh = bh.at[:, :n_cls].set(bcls).at[:, n_cls:n_out].set(breg)

    try:
        call = _build_rpn_call(B, R, TM, Kp, Cp, NPAD, hw_pad, vmem_limit,
                               single_buffer_weights=True)
        out = call(patches, wc_pad, bc_pad, wh, bh)
    except Exception:
        # Fallback for jax builds that reject pipeline_mode=pl.Buffered(1);
        # default double-buffering is correct (just ~2x weight VMEM).
        call = _build_rpn_call(B, R, TM, Kp, Cp, NPAD, hw_pad, vmem_limit,
                               single_buffer_weights=False)
        out = call(patches, wc_pad, bc_pad, wh, bh)

    # Wrapper-side layout plumbing: drop row/lane padding, split heads,
    # back to PyTorch NCHW output convention.
    out = out[:, :HW, :n_out].astype(jnp.float32).reshape(B, H, W, n_out)
    cls = jnp.transpose(out[..., :n_cls], (0, 3, 1, 2))
    reg = jnp.transpose(out[..., n_cls:], (0, 3, 1, 2))
    return cls, reg


def rpn_reference(x_nchw, params):
    """Pure-JAX f32 reference (lax conv) for numerical validation."""
    wc, bc, wcls, bcls, wreg, breg = params
    Cin = x_nchw.shape[1]
    Cmid = wc.shape[-1]
    x = jnp.transpose(x_nchw, (0, 2, 3, 1))                    # NHWC
    wc3 = wc.reshape(3, 3, Cin, Cmid)                          # HWIO
    dn = jax.lax.conv_dimension_numbers(x.shape, wc3.shape,
                                        ("NHWC", "HWIO", "NHWC"))
    feat = jax.lax.conv_general_dilated(x, wc3, (1, 1), "SAME",
                                        dimension_numbers=dn)
    feat = jnp.maximum(feat + bc.reshape(1, 1, 1, -1), 0.0)
    cls = jnp.einsum("bhwc,cd->bhwd", feat, wcls) + bcls.reshape(1, 1, 1, -1)
    reg = jnp.einsum("bhwc,cd->bhwd", feat, wreg) + breg.reshape(1, 1, 1, -1)
    return (jnp.transpose(cls, (0, 3, 1, 2)),
            jnp.transpose(reg, (0, 3, 1, 2)))


def init_params(key, cin=4, cmid=32, num_anchors=9):
    ks = jax.random.split(key, 6)
    wc = jax.random.normal(ks[0], (9, cin, cmid), jnp.float32) * 0.05
    bc = jax.random.normal(ks[1], (1, cmid), jnp.float32) * 0.01
    wcls = jax.random.normal(ks[2], (cmid, num_anchors * 2), jnp.float32) * 0.05
    bcls = jax.random.normal(ks[3], (1, num_anchors * 2), jnp.float32) * 0.01
    wreg = jax.random.normal(ks[4], (cmid, num_anchors * 4), jnp.float32) * 0.05
    breg = jax.random.normal(ks[5], (1, num_anchors * 4), jnp.float32) * 0.01
    return wc, bc, wcls, bcls, wreg, breg


if __name__ == "__main__":
    key = jax.random.PRNGKey(0)
    k_x, k_p = jax.random.split(key)

    B, Cin, H, W = 2, 4, 16, 16
    x = jax.random.normal(k_x, (B, Cin, H, W), jnp.float32)    # NCHW like PyTorch
    params = init_params(k_p, cin=Cin, cmid=32, num_anchors=9)

    cls_out, reg_out = jax.block_until_ready(rpn_forward(x, params))
    cls_ref, reg_ref = rpn_reference(x, params)

    assert cls_out.shape == (B, 18, H, W) and reg_out.shape == (B, 36, H, W)
    # bf16 operands / bf16 output slab with f32 accumulation -> loosened tol.
    assert jnp.allclose(cls_out, cls_ref, atol=2e-2, rtol=2e-2)
    assert jnp.allclose(reg_out, reg_ref, atol=2e-2, rtol=2e-2)

    print("KERNEL_OK")
</pallas_src>

<mosaic_0001>
module attributes {stable_mosaic.version = 11 : i64} {
  func.func @rpn_kernel(%arg0: i32, %arg1: i32, %arg2: memref<1x256x128xbf16, #tpu.memory_space<vmem>>, %arg3: memref<128x128xbf16, #tpu.memory_space<vmem>>, %arg4: memref<1x128xf32, #tpu.memory_space<vmem>>, %arg5: memref<128x128xbf16, #tpu.memory_space<vmem>>, %arg6: memref<1x128xf32, #tpu.memory_space<vmem>>, %arg7: memref<1x256x128xbf16, #tpu.memory_space<vmem>>) attributes {dimension_semantics = [#tpu.dimension_semantics<parallel>, #tpu.dimension_semantics<parallel>], iteration_bounds = array<i64: 2, 1>, scalar_prefetch = 0 : i64, scratch_operands = 0 : i64, tpu.core_type = #tpu.core_type<tc>, window_params = [{transform_indices = @transform_0, window_bounds = array<i64: 1, 256, 128>}, {pipeline_mode = #tpu.pipeline_mode<synchronous>, transform_indices = @transform_1, window_bounds = array<i64: 128, 128>}, {pipeline_mode = #tpu.pipeline_mode<synchronous>, transform_indices = @transform_2, window_bounds = array<i64: 1, 128>}, {pipeline_mode = #tpu.pipeline_mode<synchronous>, transform_indices = @transform_3, window_bounds = array<i64: 128, 128>}, {pipeline_mode = #tpu.pipeline_mode<synchronous>, transform_indices = @transform_4, window_bounds = array<i64: 1, 128>}, {transform_indices = @transform_5, window_bounds = array<i64: 1, 256, 128>}]} {
    %c0 = arith.constant 0 : index
    %c0_0 = arith.constant 0 : index
    %c0_1 = arith.constant 0 : index
    %0 = vector.load %arg2[%c0, %c0_0, %c0_1] : memref<1x256x128xbf16, #tpu.memory_space<vmem>>, vector<1x256x128xbf16>
    %1 = vector.shape_cast %0 : vector<1x256x128xbf16> to vector<256x128xbf16>
    %c0_2 = arith.constant 0 : index
    %c0_3 = arith.constant 0 : index
    %2 = vector.load %arg3[%c0_2, %c0_3] : memref<128x128xbf16, #tpu.memory_space<vmem>>, vector<128x128xbf16>
    %cst = arith.constant dense<0.000000e+00> : vector<256x128xf32>
    %3 = tpu.matmul %1, %2, %cst {dimension_numbers = #tpu.dot_dimension_numbers<[1], [0], [0], [1], [0, 0, 1, 1], [], []>} : vector<256x128xbf16>, vector<128x128xbf16>, vector<256x128xf32> -> vector<256x128xf32>
    %c0_4 = arith.constant 0 : index
    %c0_5 = arith.constant 0 : index
    %4 = vector.load %arg4[%c0_4, %c0_5] : memref<1x128xf32, #tpu.memory_space<vmem>>, vector<1x128xf32>
    %5 = vector.broadcast %4 : vector<1x128xf32> to vector<256x128xf32>
    %6 = arith.addf %3, %5 : vector<256x128xf32>
    %cst_6 = arith.constant 0.000000e+00 : f32
    %7 = vector.broadcast %cst_6 : f32 to vector<256x128xf32>
    %8 = arith.maximumf %6, %7 : vector<256x128xf32>
    %9 = arith.truncf %8 : vector<256x128xf32> to vector<256x128xbf16>
    %c0_7 = arith.constant 0 : index
    %c0_8 = arith.constant 0 : index
    %10 = vector.load %arg5[%c0_7, %c0_8] : memref<128x128xbf16, #tpu.memory_space<vmem>>, vector<128x128xbf16>
    %cst_9 = arith.constant dense<0.000000e+00> : vector<256x128xf32>
    %11 = tpu.matmul %9, %10, %cst_9 {dimension_numbers = #tpu.dot_dimension_numbers<[1], [0], [0], [1], [0, 0, 1, 1], [], []>} : vector<256x128xbf16>, vector<128x128xbf16>, vector<256x128xf32> -> vector<256x128xf32>
    %c0_10 = arith.constant 0 : index
    %c0_11 = arith.constant 0 : index
    %12 = vector.load %arg6[%c0_10, %c0_11] : memref<1x128xf32, #tpu.memory_space<vmem>>, vector<1x128xf32>
    %13 = vector.broadcast %12 : vector<1x128xf32> to vector<256x128xf32>
    %14 = arith.addf %11, %13 : vector<256x128xf32>
    %15 = arith.truncf %14 : vector<256x128xf32> to vector<256x128xbf16>
    %c0_12 = arith.constant 0 : index
    %c0_13 = arith.constant 0 : index
    %c0_14 = arith.constant 0 : index
    %16 = vector.load %arg7[%c0_12, %c0_13, %c0_14] : memref<1x256x128xbf16, #tpu.memory_space<vmem>>, vector<1x256x128xbf16>
    %17 = vector.shape_cast %16 : vector<1x256x128xbf16> to vector<256x128xbf16>
    %18 = vector.shape_cast %15 : vector<256x128xbf16> to vector<1x256x128xbf16>
    tpu.vector_store %arg7[%c0_12, %c0_13, %c0_14], %18 {strides = array<i32>} : memref<1x256x128xbf16, #tpu.memory_space<vmem>>, vector<1x256x128xbf16>,
    return
  }
  func.func @transform_0(%arg0: i32, %arg1: i32) -> (i32, i32, i32) {
    %c0_i32 = arith.constant 0 : i32
    %c0_i32_0 = arith.constant 0 : i32
    return %arg0, %arg1, %c0_i32 : i32, i32, i32
  }
  func.func @transform_1(%arg0: i32, %arg1: i32) -> (i32, i32) {
    %c0_i32 = arith.constant 0 : i32
    %c0_i32_0 = arith.constant 0 : i32
    %c0_i32_1 = arith.constant 0 : i32
    return %c0_i32, %c0_i32_0 : i32, i32
  }
  func.func @transform_2(%arg0: i32, %arg1: i32) -> (i32, i32) {
    %c0_i32 = arith.constant 0 : i32
    %c0_i32_0 = arith.constant 0 : i32
    %c0_i32_1 = arith.constant 0 : i32
    return %c0_i32, %c0_i32_0 : i32, i32
  }
  func.func @transform_3(%arg0: i32, %arg1: i32) -> (i32, i32) {
    %c0_i32 = arith.constant 0 : i32
    %c0_i32_0 = arith.constant 0 : i32
    %c0_i32_1 = arith.constant 0 : i32
    return %c0_i32, %c0_i32_0 : i32, i32
  }
  func.func @transform_4(%arg0: i32, %arg1: i32) -> (i32, i32) {
    %c0_i32 = arith.constant 0 : i32
    %c0_i32_0 = arith.constant 0 : i32
    %c0_i32_1 = arith.constant 0 : i32
    return %c0_i32, %c0_i32_0 : i32, i32
  }
  func.func @transform_5(%arg0: i32, %arg1: i32) -> (i32, i32, i32) {
    %c0_i32 = arith.constant 0 : i32
    %c0_i32_0 = arith.constant 0 : i32
    return %arg0, %arg1, %c0_i32 : i32, i32, i32
  }
}

module attributes {stable_mosaic.version = 11 : i64} {
  func.func @rpn_kernel(%arg0: i32, %arg1: i32, %arg2: memref<1x256x128xbf16, #tpu.memory_space<vmem>>, %arg3: memref<128x128xbf16, #tpu.memory_space<vmem>>, %arg4: memref<1x128xf32, #tpu.memory_space<vmem>>, %arg5: memref<128x128xbf16, #tpu.memory_space<vmem>>, %arg6: memref<1x128xf32, #tpu.memory_space<vmem>>, %arg7: memref<1x256x128xbf16, #tpu.memory_space<vmem>>) attributes {dimension_semantics = [#tpu.dimension_semantics<parallel>, #tpu.dimension_semantics<parallel>], iteration_bounds = array<i64: 2, 1>, scalar_prefetch = 0 : i64, scratch_operands = 0 : i64, tpu.core_type = #tpu.core_type<tc>, window_params = [{transform_indices = @transform_0, window_bounds = array<i64: 1, 256, 128>}, {pipeline_mode = #tpu.pipeline_mode<synchronous>, transform_indices = @transform_1, window_bounds = array<i64: 128, 128>}, {pipeline_mode = #tpu.pipeline_mode<synchronous>, transform_indices = @transform_2, window_bounds = array<i64: 1, 128>}, {pipeline_mode = #tpu.pipeline_mode<synchronous>, transform_indices = @transform_3, window_bounds = array<i64: 128, 128>}, {pipeline_mode = #tpu.pipeline_mode<synchronous>, transform_indices = @transform_4, window_bounds = array<i64: 1, 128>}, {transform_indices = @transform_5, window_bounds = array<i64: 1, 256, 128>}]} {
    %c0 = arith.constant 0 : index
    %c0_0 = arith.constant 0 : index
    %c0_1 = arith.constant 0 : index
    %0 = vector.load %arg2[%c0, %c0_0, %c0_1] : memref<1x256x128xbf16, #tpu.memory_space<vmem>>, vector<1x256x128xbf16>
    %1 = vector.shape_cast %0 : vector<1x256x128xbf16> to vector<256x128xbf16>
    %c0_2 = arith.constant 0 : index
    %c0_3 = arith.constant 0 : index
    %2 = vector.load %arg3[%c0_2, %c0_3] : memref<128x128xbf16, #tpu.memory_space<vmem>>, vector<128x128xbf16>
    %cst = arith.constant dense<0.000000e+00> : vector<256x128xf32>
    %3 = tpu.matmul %1, %2, %cst {dimension_numbers = #tpu.dot_dimension_numbers<[1], [0], [0], [1], [0, 0, 1, 1], [], []>} : vector<256x128xbf16>, vector<128x128xbf16>, vector<256x128xf32> -> vector<256x128xf32>
    %c0_4 = arith.constant 0 : index
    %c0_5 = arith.constant 0 : index
    %4 = vector.load %arg4[%c0_4, %c0_5] : memref<1x128xf32, #tpu.memory_space<vmem>>, vector<1x128xf32>
    %5 = vector.broadcast %4 : vector<1x128xf32> to vector<256x128xf32>
    %6 = arith.addf %3, %5 : vector<256x128xf32>
    %cst_6 = arith.constant 0.000000e+00 : f32
    %7 = vector.broadcast %cst_6 : f32 to vector<256x128xf32>
    %8 = arith.maximumf %6, %7 : vector<256x128xf32>
    %9 = arith.truncf %8 : vector<256x128xf32> to vector<256x128xbf16>
    %c0_7 = arith.constant 0 : index
    %c0_8 = arith.constant 0 : index
    %10 = vector.load %arg5[%c0_7, %c0_8] : memref<128x128xbf16, #tpu.memory_space<vmem>>, vector<128x128xbf16>
    %cst_9 = arith.constant dense<0.000000e+00> : vector<256x128xf32>
    %11 = tpu.matmul %9, %10, %cst_9 {dimension_numbers = #tpu.dot_dimension_numbers<[1], [0], [0], [1], [0, 0, 1, 1], [], []>} : vector<256x128xbf16>, vector<128x128xbf16>, vector<256x128xf32> -> vector<256x128xf32>
    %c0_10 = arith.constant 0 : index
    %c0_11 = arith.constant 0 : index
    %12 = vector.load %arg6[%c0_10, %c0_11] : memref<1x128xf32, #tpu.memory_space<vmem>>, vector<1x128xf32>
    %13 = vector.broadcast %12 : vector<1x128xf32> to vector<256x128xf32>
    %14 = arith.addf %11, %13 : vector<256x128xf32>
    %15 = arith.truncf %14 : vector<256x128xf32> to vector<256x128xbf16>
    %c0_12 = arith.constant 0 : index
    %c0_13 = arith.constant 0 : index
    %c0_14 = arith.constant 0 : index
    %16 = vector.load %arg7[%c0_12, %c0_13, %c0_14] : memref<1x256x128xbf16, #tpu.memory_space<vmem>>, vector<1x256x128xbf16>
    %17 = vector.shape_cast %16 : vector<1x256x128xbf16> to vector<256x128xbf16>
    %18 = vector.shape_cast %15 : vector<256x128xbf16> to vector<1x256x128xbf16>
    tpu.vector_store %arg7[%c0_12, %c0_13, %c0_14], %18 {strides = array<i32>} : memref<1x256x128xbf16, #tpu.memory_space<vmem>>, vector<1x256x128xbf16>,
    return
  }
  func.func @transform_0(%arg0: i32, %arg1: i32) -> (i32, i32, i32) {
    %c0_i32 = arith.constant 0 : i32
    %c0_i32_0 = arith.constant 0 : i32
    return %arg0, %arg1, %c0_i32 : i32, i32, i32
  }
  func.func @transform_1(%arg0: i32, %arg1: i32) -> (i32, i32) {
    %c0_i32 = arith.constant 0 : i32
    %c0_i32_0 = arith.constant 0 : i32
    %c0_i32_1 = arith.constant 0 : i32
    return %c0_i32, %c0_i32_0 : i32, i32
  }
  func.func @transform_2(%arg0: i32, %arg1: i32) -> (i32, i32) {
    %c0_i32 = arith.constant 0 : i32
    %c0_i32_0 = arith.constant 0 : i32
    %c0_i32_1 = arith.constant 0 : i32
    return %c0_i32, %c0_i32_0 : i32, i32
  }
  func.func @transform_3(%arg0: i32, %arg1: i32) -> (i32, i32) {
    %c0_i32 = arith.constant 0 : i32
    %c0_i32_0 = arith.constant 0 : i32
    %c0_i32_1 = arith.constant 0 : i32
    return %c0_i32, %c0_i32_0 : i32, i32
  }
  func.func @transform_4(%arg0: i32, %arg1: i32) -> (i32, i32) {
    %c0_i32 = arith.constant 0 : i32
    %c0_i32_0 = arith.constant 0 : i32
    %c0_i32_1 = arith.constant 0 : i32
    return %c0_i32, %c0_i32_0 : i32, i32
  }
  func.func @transform_5(%arg0: i32, %arg1: i32) -> (i32, i32, i32) {
    %c0_i32 = arith.constant 0 : i32
    %c0_i32_0 = arith.constant 0 : i32
    return %arg0, %arg1, %c0_i32 : i32, i32, i32
  }
}

</mosaic_0001>

<llo_original>
// kernel: tpu_custom_call.1
$region0: #{tpu_custom_call.1}
  #allocation0 [shape = 'u32[]', space=smem, size = 0x4, offset = 0x4, fixed_abs, tag = 'smem constant byte address 0x4 - core index']
  #allocation1 [shape = 'u32[144,128]{1,0:T(1,128)}', space=vmem, size = 0x12000, scoped, tag = 'internal scratch']
  %s0 = inlined_call_operand.hbm [shape: bf16[2,256,128], index: 0, kind: input, shape index: {}]
  %s1 = inlined_call_operand.hbm [shape: bf16[128,128], index: 1, kind: input, shape index: {}]
  %s2 = inlined_call_operand.vmem [shape: f32[1,128], index: 2, kind: input, shape index: {}]
  %s3 = inlined_call_operand.hbm [shape: bf16[128,128], index: 3, kind: input, shape index: {}]
  %s4 = inlined_call_operand.vmem [shape: f32[1,128], index: 4, kind: input, shape index: {}]
  %s5 = inlined_call_operand.hbm [shape: bf16[2,256,128], index: 5, kind: output, shape index: {}]
  %s6 = sld [smem:[#allocation0]]
  $region65: #{tpu_custom_call.1} parent=0
    _
  %s8 = ssub.s32 1, %s6
  %s9 = scalar_select 0, %s8, %s6
  $region1: #{tpu_custom_call.1} parent=0
    #allocation2 [shape = 'u8[131072]{0}', space=vmem, size = 0x20000, scoped, tag = 'input window, operand 0']
    #allocation3 [shape = 's32[2]{0}', space=sflag, size = 0x8, scoped, tag = 'scoped memory for tpu_custom_call.1']
    #allocation4 [shape = 's32[2]{0}', space=sflag, size = 0x8, scoped, tag = 'scoped memory for tpu_custom_call.1']
    #allocation5 [shape = 'u8[32768]{0}', space=vmem, size = 0x8000, scoped, tag = 'input window, operand 1, single buffered']
    #allocation6 [shape = 's32[1]{0}', space=sflag, size = 0x4, scoped, tag = 'scoped memory for tpu_custom_call.1']
    #allocation7 [shape = 'u8[32768]{0}', space=vmem, size = 0x8000, scoped, tag = 'input window, operand 3, single buffered']
    #allocation8 [shape = 'u8[131072]{0}', space=vmem, size = 0x20000, scoped, tag = 'output window, operand 0']
    %10 = vsyncpa [#allocation3], 0
    %s11 = scalar_lea.sflag [#allocation3], 1
    %12 = vsyncpa %s11, 0
    %13 = vsyncpa [#allocation6], 0
    %14 = vsyncpa [#allocation4], 0
    %s15 = scalar_lea.sflag [#allocation4], 1
    %16 = vsyncpa %s15, 0
    loop: start=0, step=1, limit=4
    $region2: #{tpu_custom_call.1} parent=1 // loop_pre_header
      _
    $region3: #{tpu_custom_call.1} parent=1 // loop_header
      %s18 = sphi 0, %s22
      %p19 = scmp.ge.s32.totalorder %s18, 4
      %s25 = sphi 0, %s37
      %s26 = sphi 0, %s33
      %s27 = sphi 0, %s25
      %s28 = sphi 0, %s26
      %s29 = sphi 0, %s27
      %s30 = sphi 0, %s28
      %s42 = sphi 0, %s44
      %s45 = sphi 0, %s42
      %s46 = sphi 0, %s45
      %s62 = sphi 0, %s46
      %s66 = sphi 0, %s66
      %s68 = sphi 0, %s66
      %s69 = sphi 0, %s68
      %s83 = sphi 0, %s69
      %s87 = sphi 0, %s87
      %s89 = sphi 0, %s87
      %s90 = sphi 0, %s89
      %s104 = sphi 0, %s90
      %s108 = sphi 0, %s108
      %s110 = sphi 0, %s108
      %s111 = sphi 0, %s110
      %s125 = sphi 0, %s111
      %s129 = sphi 0, %s129
      %s131 = sphi 0, %s129
      %s132 = sphi 0, %s131
      %s146 = sphi 0, %s132
      %s154 = sphi 0, %s156
      %s157 = sphi 0, %s154
      %s158 = sphi 0, %s157
      %s174 = sphi 0, %s158
    $region4: #{tpu_custom_call.1} parent=1 // loop_header_branch
      %21 = sbr.rel (%p19) target = $region8
    $region5: #{tpu_custom_call.1} parent=1 // loop_body
      %s23 = ssub.s32 %s18, 1
      %s24 = ssub.s32 %s18, 2
      %s31 = sadd.s32 1, %s26
      %p32 = scmp.ge.s32.totalorder %s31, 1
      %s33 = scalar_select %p32, 0, %s31
      %s34 = sadd.s32 1, %s25
      %s35 = scalar_select %p32, %s34, %s25
      %p36 = scmp.ge.s32.totalorder %s35, 2
      %s37 = scalar_select %p36, 0, %s35
      %s38 = ssub.s32 %s25, %s37
      %s39 = ssub.s32 %s26, %s33
      %s40 = sor.u32 %s38, %s39
      %p41 = scmp.eq.s32.totalorder %s40, 0
      %s43 = sadd.s32 %s42, 1
      %s44 = scalar_select %p41, %s42, %s43
      %p47 = pneg %p41
      %p48 = scmp.eq.s32.totalorder %s18, 1
      %p49 = por %p47, %p48
      %p50 = scmp.ne.s32.totalorder %s42, %s45
      %p51 = scmp.eq.s32.totalorder %s18, 0
      %p52 = por %p50, %p51
      %p53 = scmp.ne.s32.totalorder %s42, %s45
      %p54 = scmp.eq.s32.totalorder %s23, 1
      %p55 = por %p53, %p54
      %p56 = scmp.ne.s32.totalorder %s45, %s46
      %p57 = scmp.eq.s32.totalorder %s23, 0
      %p58 = por %p56, %p57
      %p59 = scmp.ne.s32.totalorder %s45, %s46
      %p60 = scmp.eq.s32.totalorder %s24, 1
      %p61 = por %p59, %p60
      %p63 = scmp.ne.s32.totalorder %s46, %s62
      %p64 = scmp.eq.s32.totalorder %s24, 0
      %p65 = por %p63, %p64
      %s67 = sadd.s32 %s66, 1
      %p70 = scmp.eq.s32.totalorder %s18, 1
      %p71 = scmp.ne.s32.totalorder %s66, %s68
      %p72 = scmp.eq.s32.totalorder %s18, 0
      %p73 = por %p71, %p72
      %p74 = scmp.ne.s32.totalorder %s66, %s68
      %p75 = scmp.eq.s32.totalorder %s23, 1
      %p76 = por %p74, %p75
      %p77 = scmp.ne.s32.totalorder %s68, %s69
      %p78 = scmp.eq.s32.totalorder %s23, 0
      %p79 = por %p77, %p78
      %p80 = scmp.ne.s32.totalorder %s68, %s69
      %p81 = scmp.eq.s32.totalorder %s24, 1
      %p82 = por %p80, %p81
      %p84 = scmp.ne.s32.totalorder %s69, %s83
      %p85 = scmp.eq.s32.totalorder %s24, 0
      %p86 = por %p84, %p85
      %s88 = sadd.s32 %s87, 1
      %p91 = scmp.eq.s32.totalorder %s18, 1
      %p92 = scmp.ne.s32.totalorder %s87, %s89
      %p93 = scmp.eq.s32.totalorder %s18, 0
      %p94 = por %p92, %p93
      %p95 = scmp.ne.s32.totalorder %s87, %s89
      %p96 = scmp.eq.s32.totalorder %s23, 1
      %p97 = por %p95, %p96
      %p98 = scmp.ne.s32.totalorder %s89, %s90
      %p99 = scmp.eq.s32.totalorder %s23, 0
      %p100 = por %p98, %p99
      %p101 = scmp.ne.s32.totalorder %s89, %s90
      %p102 = scmp.eq.s32.totalorder %s24, 1
      %p103 = por %p101, %p102
      %p105 = scmp.ne.s32.totalorder %s90, %s104
      %p106 = scmp.eq.s32.totalorder %s24, 0
      %p107 = por %p105, %p106
      %s109 = sadd.s32 %s108, 1
      %p112 = scmp.eq.s32.totalorder %s18, 1
      %p113 = scmp.ne.s32.totalorder %s108, %s110
      %p114 = scmp.eq.s32.totalorder %s18, 0
      %p115 = por %p113, %p114
      %p116 = scmp.ne.s32.totalorder %s108, %s110
      %p117 = scmp.eq.s32.totalorder %s23, 1
      %p118 = por %p116, %p117
      %p119 = scmp.ne.s32.totalorder %s110, %s111
      %p120 = scmp.eq.s32.totalorder %s23, 0
      %p121 = por %p119, %p120
      %p122 = scmp.ne.s32.totalorder %s110, %s111
      %p123 = scmp.eq.s32.totalorder %s24, 1
      %p124 = por %p122, %p123
      %p126 = scmp.ne.s32.totalorder %s111, %s125
      %p127 = scmp.eq.s32.totalorder %s24, 0
      %p128 = por %p126, %p127
      %s130 = sadd.s32 %s129, 1
      %p133 = scmp.eq.s32.totalorder %s18, 1
      %p134 = scmp.ne.s32.totalorder %s129, %s131
      %p135 = scmp.eq.s32.totalorder %s18, 0
      %p136 = por %p134, %p135
      %p137 = scmp.ne.s32.totalorder %s129, %s131
      %p138 = scmp.eq.s32.totalorder %s23, 1
      %p139 = por %p137, %p138
      %p140 = scmp.ne.s32.totalorder %s131, %s132
      %p141 = scmp.eq.s32.totalorder %s23, 0
      %p142 = por %p140, %p141
      %p143 = scmp.ne.s32.totalorder %s131, %s132
      %p144 = scmp.eq.s32.totalorder %s24, 1
      %p145 = por %p143, %p144
      %p147 = scmp.ne.s32.totalorder %s132, %s146
      %p148 = scmp.eq.s32.totalorder %s24, 0
      %p149 = por %p147, %p148
      %s150 = ssub.s32 %s25, %s37
      %s151 = ssub.s32 %s26, %s33
      %s152 = sor.u32 %s150, %s151
      %p153 = scmp.eq.s32.totalorder %s152, 0
      %s155 = sadd.s32 %s154, 1
      %s156 = scalar_select %p153, %s154, %s155
      %p159 = pneg %p153
      %p160 = scmp.eq.s32.totalorder %s18, 1
      %p161 = por %p159, %p160
      %p162 = scmp.ne.s32.totalorder %s154, %s157
      %p163 = scmp.eq.s32.totalorder %s18, 0
      %p164 = por %p162, %p163
      %p165 = scmp.ne.s32.totalorder %s154, %s157
      %p166 = scmp.eq.s32.totalorder %s23, 1
      %p167 = por %p165, %p166
      %p168 = scmp.ne.s32.totalorder %s157, %s158
      %p169 = scmp.eq.s32.totalorder %s23, 0
      %p170 = por %p168, %p169
      %p171 = scmp.ne.s32.totalorder %s157, %s158
      %p172 = scmp.eq.s32.totalorder %s24, 1
      %p173 = por %p171, %p172
      %p175 = scmp.ne.s32.totalorder %s158, %s174
      %p176 = scmp.eq.s32.totalorder %s24, 0
      %p177 = por %p175, %p176
      %p178 = scmp.le.s32.totalorder 1, %s18
      %p179 = scmp.lt.s32.totalorder %s18, 3
      %p180 = pnand %p178, %p179
      %p181 = pneg %p180
      // Predicated region
      $region9: #{tpu_custom_call.1} parent=5 // pred_check
        _
      $region10: #{tpu_custom_call.1} parent=5 // pred_check_branch
        %183 = sbr.rel (%p180) target = $region12
      $region11: #{tpu_custom_call.1} parent=5 // pred_region
        %s184 = ssub.s32 %s18, 1
        // Predicated region
        $region13: #{tpu_custom_call.1} parent=11 // pred_check
          %p185 = pneg %p79
        $region14: #{tpu_custom_call.1} parent=11 // pred_check_branch
          %187 = sbr.rel (%p185) target = $region16
        $region15: #{tpu_custom_call.1} parent=11 // pred_region
          %s189 = ssub.s32 1024, 1024
          %190 = vsyncadd [#allocation6], %s189
          %s191 = sshll.u32 [#allocation5], 4
          %s192 = int_to_ptr.vmem [resolvable:$true] %s191
          %197 = dma.hbm_to_vmem [thread:$0]  %s1, 1024, %s192, [#allocation6], 64, 64, 4
        $region16: #{tpu_custom_call.1} parent=11 // pred_fallthru
          _
        // Predicated region
        $region17: #{tpu_custom_call.1} parent=11 // pred_check
          %p198 = pneg %p100
        $region18: #{tpu_custom_call.1} parent=11 // pred_check_branch
          %200 = sbr.rel (%p198) target = $region20
        $region19: #{tpu_custom_call.1} parent=11 // pred_region
          _
        $region20: #{tpu_custom_call.1} parent=11 // pred_fallthru
          _
        // Predicated region
        $region21: #{tpu_custom_call.1} parent=11 // pred_check
          %p201 = pneg %p121
        $region22: #{tpu_custom_call.1} parent=11 // pred_check_branch
          %203 = sbr.rel (%p201) target = $region24
        $region23: #{tpu_custom_call.1} parent=11 // pred_region
          %s205 = ssub.s32 1024, 1024
          %206 = vsyncadd [#allocation6], %s205
          %s207 = sshll.u32 [#allocation7], 4
          %s208 = int_to_ptr.vmem [resolvable:$true] %s207
          %213 = dma.hbm_to_vmem [thread:$0]  %s3, 1024, %s208, [#allocation6], 64, 64, 4
        $region24: #{tpu_custom_call.1} parent=11 // pred_fallthru
          _
        // Predicated region
        $region25: #{tpu_custom_call.1} parent=11 // pred_check
          %p214 = pneg %p142
        $region26: #{tpu_custom_call.1} parent=11 // pred_check_branch
          %216 = sbr.rel (%p214) target = $region28
        $region27: #{tpu_custom_call.1} parent=11 // pred_region
          _
        $region28: #{tpu_custom_call.1} parent=11 // pred_fallthru
          _
      $region12: #{tpu_custom_call.1} parent=5 // pred_fallthru
        _
      %p217 = scmp.lt.s32.totalorder %s18, 2
      // Predicated region
      $region29: #{tpu_custom_call.1} parent=5 // pred_check
        %p218 = pneg %p217
      $region30: #{tpu_custom_call.1} parent=5 // pred_check_branch
        %220 = sbr.rel (%p218) target = $region32
      $region31: #{tpu_custom_call.1} parent=5 // pred_region
        // Predicated region
        $region33: #{tpu_custom_call.1} parent=31 // pred_check
          %p221 = pneg %p52
        $region34: #{tpu_custom_call.1} parent=31 // pred_check_branch
          %223 = sbr.rel (%p221) target = $region36
        $region35: #{tpu_custom_call.1} parent=31 // pred_region
          %s224 = sand.u32 %s42, 1
          %s225 = scalar_lea.sflag [#allocation3], %s224
          %s226 = sand.u32 %s42, 1
          %s227 = smul.addr %s226, 128
          %s228 = scalar_lea.vmem [#allocation2], %s227
          %s229 = smul.u32 32, %s26
          %s231 = ssub.s32 2048, 2048
          %232 = vsyncadd %s225, %s231
          %s233 = smul.addr %s25, 32
          %s234 = sadd.s32 %s229, %s233
          %s235 = smul.addr %s234, 64
          %s236 = scalar_lea.hbm %s0, %s235
          %s237 = sshll.u32 %s228, 4
          %s238 = int_to_ptr.vmem [resolvable:$true] %s237
          %243 = dma.hbm_to_vmem [thread:$0]  %s236, 2048, %s238, %s225, 64, 64, 4
        $region36: #{tpu_custom_call.1} parent=31 // pred_fallthru
          _
      $region32: #{tpu_custom_call.1} parent=5 // pred_fallthru
        _
      %p244 = scmp.le.s32.totalorder 1, %s18
      %p245 = scmp.lt.s32.totalorder %s18, 3
      %p246 = pnand %p244, %p245
      %p247 = pneg %p246
      // Predicated region
      $region37: #{tpu_custom_call.1} parent=5 // pred_check
        _
      $region38: #{tpu_custom_call.1} parent=5 // pred_check_branch
        %249 = sbr.rel (%p246) target = $region40
      $region39: #{tpu_custom_call.1} parent=5 // pred_region
        %s250 = ssub.s32 %s18, 1
        %s251 = sand.u32 %s45, 1
        %s252 = scalar_lea.sflag [#allocation3], %s251
        %s253 = sand.u32 %s45, 1
        %s254 = smul.addr %s253, 128
        %s255 = scalar_lea.vmem [#allocation2], %s254
        // Predicated region
        $region41: #{tpu_custom_call.1} parent=39 // pred_check
          %p256 = pneg %p58
        $region42: #{tpu_custom_call.1} parent=39 // pred_check_branch
          %258 = sbr.rel (%p256) target = $region44
        $region43: #{tpu_custom_call.1} parent=39 // pred_region
          %259 = dma.done %s252, 2048
        $region44: #{tpu_custom_call.1} parent=39 // pred_fallthru
          _
        // Predicated region
        $region45: #{tpu_custom_call.1} parent=39 // pred_check
          %p260 = pneg %p79
        $region46: #{tpu_custom_call.1} parent=39 // pred_check_branch
          %262 = sbr.rel (%p260) target = $region48
        $region47: #{tpu_custom_call.1} parent=39 // pred_region
          %263 = dma.done [#allocation6], 1024
        $region48: #{tpu_custom_call.1} parent=39 // pred_fallthru
          _
        // Predicated region
        $region49: #{tpu_custom_call.1} parent=39 // pred_check
          %p264 = pneg %p121
        $region50: #{tpu_custom_call.1} parent=39 // pred_check_branch
          %266 = sbr.rel (%p264) target = $region52
        $region51: #{tpu_custom_call.1} parent=39 // pred_region
          %267 = dma.done [#allocation6], 1024
        $region52: #{tpu_custom_call.1} parent=39 // pred_fallthru
          _
        %s268 = sand.u32 %s45, 1
        %s269 = scalar_lea.sflag [#allocation3], %s268
        %s270 = sand.u32 %s45, 1
        %s271 = smul.addr %s270, 128
        %s272 = scalar_lea.vmem [#allocation2], %s271
        %p273 = pneg %p58
        %p274 = pneg %p55
        %p275 = pneg %p79
        %p276 = pneg %p76
        %p277 = pneg %p100
        %p278 = pneg %p97
        %p279 = pneg %p121
        %p280 = pneg %p118
        %p281 = pneg %p142
        %p282 = pneg %p139
        %p283 = pneg %p170
        %p284 = pneg %p167
        %s285 = sand.u32 %s157, 1
        %s286 = scalar_lea.sflag [#allocation4], %s285
        %s287 = sand.u32 %s157, 1
        %s288 = smul.addr %s287, 128
        %s289 = scalar_lea.vmem [#allocation8], %s288
        %s290 = smul.u32 32, %s28
        %s291 = smul.u32 32, %s28
        %v293 = vld [vmem:[%s255] sm:$0xf]
        %v294 = vld [vmem:[%s255 + $0x4] sm:$0xf]
        %v295 = vld [vmem:[%s255 + $0x8] sm:$0xf]
        %v296 = vld [vmem:[%s255 + $0xc] sm:$0xf]
        %v297 = vld [vmem:[%s255 + $0x10] sm:$0xf]
        %v298 = vld [vmem:[%s255 + $0x14] sm:$0xf]
        %v299 = vld [vmem:[%s255 + $0x18] sm:$0xf]
        %v300 = vld [vmem:[%s255 + $0x1c] sm:$0xf]
        %v301 = vld [vmem:[%s255 + $0x20] sm:$0xf]
        %v302 = vld [vmem:[%s255 + $0x24] sm:$0xf]
        %v303 = vld [vmem:[%s255 + $0x28] sm:$0xf]
        %v304 = vld [vmem:[%s255 + $0x2c] sm:$0xf]
        %v305 = vld [vmem:[%s255 + $0x30] sm:$0xf]
        %v306 = vld [vmem:[%s255 + $0x34] sm:$0xf]
        %v307 = vld [vmem:[%s255 + $0x38] sm:$0xf]
        %v308 = vld [vmem:[%s255 + $0x3c] sm:$0xf]
        %v309 = vld [vmem:[%s255 + $0x40] sm:$0xf]
        %v310 = vld [vmem:[%s255 + $0x44] sm:$0xf]
        %v311 = vld [vmem:[%s255 + $0x48] sm:$0xf]
        %v312 = vld [vmem:[%s255 + $0x4c] sm:$0xf]
        %v313 = vld [vmem:[%s255 + $0x50] sm:$0xf]
        %v314 = vld [vmem:[%s255 + $0x54] sm:$0xf]
        %v315 = vld [vmem:[%s255 + $0x58] sm:$0xf]
        %v316 = vld [vmem:[%s255 + $0x5c] sm:$0xf]
        %v317 = vld [vmem:[%s255 + $0x60] sm:$0xf]
        %v318 = vld [vmem:[%s255 + $0x64] sm:$0xf]
        %v319 = vld [vmem:[%s255 + $0x68] sm:$0xf]
        %v320 = vld [vmem:[%s255 + $0x6c] sm:$0xf]
        %v321 = vld [vmem:[%s255 + $0x70] sm:$0xf]
        %v322 = vld [vmem:[%s255 + $0x74] sm:$0xf]
        %v323 = vld [vmem:[%s255 + $0x78] sm:$0xf]
        %v324 = vld [vmem:[%s255 + $0x7c] sm:$0xf]
        %v325 = vld [vmem:[#allocation5] sm:$0xf]
        %v326 = vld [vmem:[#allocation5 + $0x4] sm:$0xf]
        %v327 = vld [vmem:[#allocation5 + $0x8] sm:$0xf]
        %v328 = vld [vmem:[#allocation5 + $0xc] sm:$0xf]
        %v329 = vld [vmem:[#allocation5 + $0x10] sm:$0xf]
        %v330 = vld [vmem:[#allocation5 + $0x14] sm:$0xf]
        %v331 = vld [vmem:[#allocation5 + $0x18] sm:$0xf]
        %v332 = vld [vmem:[#allocation5 + $0x1c] sm:$0xf]
        %v333 = vld [vmem:[#allocation5 + $0x20] sm:$0xf]
        %v334 = vld [vmem:[#allocation5 + $0x24] sm:$0xf]
        %v335 = vld [vmem:[#allocation5 + $0x28] sm:$0xf]
        %v336 = vld [vmem:[#allocation5 + $0x2c] sm:$0xf]
        %v337 = vld [vmem:[#allocation5 + $0x30] sm:$0xf]
        %v338 = vld [vmem:[#allocation5 + $0x34] sm:$0xf]
        %v339 = vld [vmem:[#allocation5 + $0x38] sm:$0xf]
        %v340 = vld [vmem:[#allocation5 + $0x3c] sm:$0xf]
        %v341 = vld [vmem:[%s2] sm:$0x1]
        %v343 = vlaneseq
        %v344 = vshrl.u32 %v343, 7
        %v345 = vsub.s32 0, %v344
        %v346 = vrot.slane %v341, %v345
        %v380 = vunpack.c.l.b16 %v293
        %v381 = vunpack.c.l.b16 %v294
        %v382 = vunpack.c.l.b16 %v295
        %v383 = vunpack.c.l.b16 %v296
        %v384 = vunpack.c.l.b16 %v297
        %v385 = vunpack.c.l.b16 %v298
        %v386 = vunpack.c.l.b16 %v299
        %v387 = vunpack.c.l.b16 %v300
        %v388 = vunpack.c.l.b16 %v301
        %v389 = vunpack.c.l.b16 %v302
        %v390 = vunpack.c.l.b16 %v303
        %v391 = vunpack.c.l.b16 %v304
        %v392 = vunpack.c.l.b16 %v305
        %v393 = vunpack.c.l.b16 %v306
        %v394 = vunpack.c.l.b16 %v307
        %v395 = vunpack.c.l.b16 %v308
        %v396 = vunpack.c.l.b16 %v309
        %v397 = vunpack.c.l.b16 %v310
        %v398 = vunpack.c.l.b16 %v311
        %v399 = vunpack.c.l.b16 %v312
        %v400 = vunpack.c.l.b16 %v313
        %v401 = vunpack.c.l.b16 %v314
        %v402 = vunpack.c.l.b16 %v315
        %v403 = vunpack.c.l.b16 %v316
        %v404 = vunpack.c.l.b16 %v317
        %v405 = vunpack.c.l.b16 %v318
        %v406 = vunpack.c.l.b16 %v319
        %v407 = vunpack.c.l.b16 %v320
        %v408 = vunpack.c.l.b16 %v321
        %v409 = vunpack.c.l.b16 %v322
        %v410 = vunpack.c.l.b16 %v323
        %v411 = vunpack.c.l.b16 %v324
        %v412 = vpack.c.b16 %v381, %v380
        %v413 = vpack.c.b16 %v383, %v382
        %v414 = vpack.c.b16 %v385, %v384
        %v415 = vpack.c.b16 %v387, %v386
        %v416 = vpack.c.b16 %v389, %v388
        %v417 = vpack.c.b16 %v391, %v390
        %v418 = vpack.c.b16 %v393, %v392
        %v419 = vpack.c.b16 %v395, %v394
        %v420 = vpack.c.b16 %v397, %v396
        %v421 = vpack.c.b16 %v399, %v398
        %v422 = vpack.c.b16 %v401, %v400
        %v423 = vpack.c.b16 %v403, %v402
        %v424 = vpack.c.b16 %v405, %v404
        %v425 = vpack.c.b16 %v407, %v406
        %v426 = vpack.c.b16 %v409, %v408
        %v427 = vpack.c.b16 %v411, %v410
        %v460 = vunpack.c.l.b16 %v325
        %v461 = vunpack.c.l.b16 %v326
        %v462 = vunpack.c.l.b16 %v327
        %v463 = vunpack.c.l.b16 %v328
        %v464 = vunpack.c.l.b16 %v329
        %v465 = vunpack.c.l.b16 %v330
        %v466 = vunpack.c.l.b16 %v331
        %v467 = vunpack.c.l.b16 %v332
        %v468 = vunpack.c.l.b16 %v333
        %v469 = vunpack.c.l.b16 %v334
        %v470 = vunpack.c.l.b16 %v335
        %v471 = vunpack.c.l.b16 %v336
        %v472 = vunpack.c.l.b16 %v337
        %v473 = vunpack.c.l.b16 %v338
        %v474 = vunpack.c.l.b16 %v339
        %v475 = vunpack.c.l.b16 %v340
        %v476 = vpack.c.b16 %v461, %v460
        %v477 = vpack.c.b16 %v463, %v462
        %v478 = vpack.c.b16 %v465, %v464
        %v479 = vpack.c.b16 %v467, %v466
        %v480 = vpack.c.b16 %v469, %v468
        %v481 = vpack.c.b16 %v471, %v470
        %v482 = vpack.c.b16 %v473, %v472
        %v483 = vpack.c.b16 %v475, %v474
        %492 = vmatprep.subr.bf16.mxu0 0
        %493 = vmatpush1.bf16.msra.mxu0 %v476
        %494 = vmatprep.subr.bf16.mxu0 0
        %495 = vmatpush1.bf16.msra.mxu0 %v477
        %496 = vmatprep.subr.bf16.mxu0 0
        %497 = vmatpush1.bf16.msra.mxu0 %v478
        %498 = vmatprep.subr.bf16.mxu0 0
        %499 = vmatpush1.bf16.msra.mxu0 %v479
        %500 = vmatprep.subr.bf16.mxu0 0
        %501 = vmatpush1.bf16.msra.mxu0 %v480
        %502 = vmatprep.subr.bf16.mxu0 0
        %503 = vmatpush1.bf16.msra.mxu0 %v481
        %504 = vmatprep.subr.bf16.mxu0 0
        %505 = vmatpush1.bf16.msra.mxu0 %v482
        %506 = vmatprep.subr.bf16.mxu0 0
        %507 = vmatpush1.bf16.msra.mxu0 %v483
        %508 = vmatprep.subr.bf16.mxu0 0
        %509 = vmatpush1.bf16.msra.mxu0 0
        %510 = vmatprep.subr.bf16.mxu0 0
        %511 = vmatpush1.bf16.msra.mxu0 0
        %512 = vmatprep.subr.bf16.mxu0 0
        %513 = vmatpush1.bf16.msra.mxu0 0
        %514 = vmatprep.subr.bf16.mxu0 0
        %515 = vmatpush1.bf16.msra.mxu0 0
        %516 = vmatprep.subr.bf16.mxu0 0
        %517 = vmatpush1.bf16.msra.mxu0 0
        %518 = vmatprep.subr.bf16.mxu0 0
        %519 = vmatpush1.bf16.msra.mxu0 0
        %520 = vmatprep.subr.bf16.mxu0 0
        %521 = vmatpush1.bf16.msra.mxu0 0
        %522 = vmatprep.subr.bf16.mxu0 0
        %523 = vmatpush1.bf16.msra.mxu0 0
        %524 = vmatprep.mubr.bf16.mxu0 0
        %525 = vmatmul.mubr.bf16.gmra.mrb[0].mxu0 %v412
        %v526 = vpop.f32.mrb[0].mxu0
        %v527 = vadd.f32 %v346, %v526
        %v528 = vpop.f32.mrb[0].mxu0
        %v529 = vpop.f32.mrb[0].mxu0
        %v530 = vadd.f32 %v346, %v529
        %v531 = vpop.f32.mrb[0].mxu0
        %532 = vmatprep.mubr.bf16.mxu0 0
        %533 = vmatmul.mubr.bf16.gmra.mrb[0].mxu0 %v413
        %v534 = vpop.f32.mrb[0].mxu0
        %v535 = vadd.f32 %v346, %v534
        %v536 = vpop.f32.mrb[0].mxu0
        %v537 = vpop.f32.mrb[0].mxu0
        %v538 = vadd.f32 %v346, %v537
        %v539 = vpop.f32.mrb[0].mxu0
        %540 = vmatprep.mubr.bf16.mxu0 0
        %541 = vmatmul.mubr.bf16.gmra.mrb[0].mxu0 %v414
        %v542 = vpop.f32.mrb[0].mxu0
        %v543 = vadd.f32 %v346, %v542
        %v544 = vpop.f32.mrb[0].mxu0
        %v545 = vpop.f32.mrb[0].mxu0
        %v546 = vadd.f32 %v346, %v545
        %v547 = vpop.f32.mrb[0].mxu0
        %548 = vmatprep.mubr.bf16.mxu0 0
        %549 = vmatmul.mubr.bf16.gmra.mrb[0].mxu0 %v415
        %v550 = vpop.f32.mrb[0].mxu0
        %v551 = vadd.f32 %v346, %v550
        %v552 = vpop.f32.mrb[0].mxu0
        %v553 = vpop.f32.mrb[0].mxu0
        %v554 = vadd.f32 %v346, %v553
        %v555 = vpop.f32.mrb[0].mxu0
        %556 = vmatprep.mubr.bf16.mxu0 0
        %557 = vmatmul.mubr.bf16.gmra.mrb[0].mxu0 %v416
        %v558 = vpop.f32.mrb[0].mxu0
        %v559 = vadd.f32 %v346, %v558
        %v560 = vpop.f32.mrb[0].mxu0
        %v561 = vpop.f32.mrb[0].mxu0
        %v562 = vadd.f32 %v346, %v561
        %v563 = vpop.f32.mrb[0].mxu0
        %564 = vmatprep.mubr.bf16.mxu0 0
        %565 = vmatmul.mubr.bf16.gmra.mrb[0].mxu0 %v417
        %v566 = vpop.f32.mrb[0].mxu0
        %v567 = vadd.f32 %v346, %v566
        %v568 = vpop.f32.mrb[0].mxu0
        %v569 = vpop.f32.mrb[0].mxu0
        %v570 = vadd.f32 %v346, %v569
        %v571 = vpop.f32.mrb[0].mxu0
        %572 = vmatprep.mubr.bf16.mxu0 0
        %573 = vmatmul.mubr.bf16.gmra.mrb[0].mxu0 %v418
        %v574 = vpop.f32.mrb[0].mxu0
        %v575 = vadd.f32 %v346, %v574
        %v576 = vpop.f32.mrb[0].mxu0
        %v577 = vpop.f32.mrb[0].mxu0
        %v578 = vadd.f32 %v346, %v577
        %v579 = vpop.f32.mrb[0].mxu0
        %580 = vmatprep.mubr.bf16.mxu0 0
        %581 = vmatmul.mubr.bf16.gmra.mrb[0].mxu0 %v419
        %v582 = vpop.f32.mrb[0].mxu0
        %v583 = vadd.f32 %v346, %v582
        %v584 = vpop.f32.mrb[0].mxu0
        %v585 = vpop.f32.mrb[0].mxu0
        %v586 = vadd.f32 %v346, %v585
        %v587 = vpop.f32.mrb[0].mxu0
        %588 = vmatprep.mubr.bf16.mxu0 0
        %589 = vmatmul.mubr.bf16.gmra.mrb[0].mxu0 %v420
        %v590 = vpop.f32.mrb[0].mxu0
        %v591 = vadd.f32 %v346, %v590
        %v592 = vpop.f32.mrb[0].mxu0
        %v593 = vpop.f32.mrb[0].mxu0
        %v594 = vadd.f32 %v346, %v593
        %v595 = vpop.f32.mrb[0].mxu0
        %596 = vmatprep.mubr.bf16.mxu0 0
        %597 = vmatmul.mubr.bf16.gmra.mrb[0].mxu0 %v421
        %v598 = vpop.f32.mrb[0].mxu0
        %v599 = vadd.f32 %v346, %v598
        %v600 = vpop.f32.mrb[0].mxu0
        %v601 = vpop.f32.mrb[0].mxu0
        %v602 = vadd.f32 %v346, %v601
        %v603 = vpop.f32.mrb[0].mxu0
        %604 = vmatprep.mubr.bf16.mxu0 0
        %605 = vmatmul.mubr.bf16.gmra.mrb[0].mxu0 %v422
        %v606 = vpop.f32.mrb[0].mxu0
        %v607 = vadd.f32 %v346, %v606
        %v608 = vpop.f32.mrb[0].mxu0
        %v609 = vpop.f32.mrb[0].mxu0
        %v610 = vadd.f32 %v346, %v609
        %v611 = vpop.f32.mrb[0].mxu0
        %612 = vmatprep.mubr.bf16.mxu0 0
        %613 = vmatmul.mubr.bf16.gmra.mrb[0].mxu0 %v423
        %v614 = vpop.f32.mrb[0].mxu0
        %v615 = vadd.f32 %v346, %v614
        %v616 = vpop.f32.mrb[0].mxu0
        %v617 = vpop.f32.mrb[0].mxu0
        %v618 = vadd.f32 %v346, %v617
        %v619 = vpop.f32.mrb[0].mxu0
        %620 = vmatprep.mubr.bf16.mxu0 0
        %621 = vmatmul.mubr.bf16.gmra.mrb[0].mxu0 %v424
        %v622 = vpop.f32.mrb[0].mxu0
        %v623 = vadd.f32 %v346, %v622
        %v624 = vpop.f32.mrb[0].mxu0
        %v625 = vpop.f32.mrb[0].mxu0
        %v626 = vadd.f32 %v346, %v625
        %v627 = vpop.f32.mrb[0].mxu0
        %628 = vmatprep.mubr.bf16.mxu0 0
        %629 = vmatmul.mubr.bf16.gmra.mrb[0].mxu0 %v425
        %v630 = vpop.f32.mrb[0].mxu0
        %v631 = vadd.f32 %v346, %v630
        %v632 = vpop.f32.mrb[0].mxu0
        %v633 = vpop.f32.mrb[0].mxu0
        %v634 = vadd.f32 %v346, %v633
        %v635 = vpop.f32.mrb[0].mxu0
        %636 = vmatprep.mubr.bf16.mxu0 0
        %637 = vmatmul.mubr.bf16.gmra.mrb[0].mxu0 %v426
        %v638 = vpop.f32.mrb[0].mxu0
        %v639 = vadd.f32 %v346, %v638
        %v640 = vpop.f32.mrb[0].mxu0
        %v641 = vpop.f32.mrb[0].mxu0
        %v642 = vadd.f32 %v346, %v641
        %v643 = vpop.f32.mrb[0].mxu0
        %644 = vmatprep.mubr.bf16.mxu0 0
        %645 = vmatmul.mubr.bf16.gmra.mrb[0].mxu0 %v427
        %v646 = vpop.f32.mrb[0].mxu0
        %v647 = vadd.f32 %v346, %v646
        %v648 = vpop.f32.mrb[0].mxu0
        %v649 = vpop.f32.mrb[0].mxu0
        %v650 = vadd.f32 %v346, %v649
        %v651 = vpop.f32.mrb[0].mxu0
        %652 = vdwg.mxu0
        %v653 = vmax.f32 %v527, 0.0
        %v654 = vmax.f32 %v530, 0.0
        %v655 = vmax.f32 %v535, 0.0
        %v656 = vmax.f32 %v538, 0.0
        %v657 = vmax.f32 %v543, 0.0
        %v658 = vmax.f32 %v546, 0.0
        %v659 = vmax.f32 %v551, 0.0
        %v660 = vmax.f32 %v554, 0.0
        %v661 = vmax.f32 %v559, 0.0
        %v662 = vmax.f32 %v562, 0.0
        %v663 = vmax.f32 %v567, 0.0
        %v664 = vmax.f32 %v570, 0.0
        %v665 = vmax.f32 %v575, 0.0
        %v666 = vmax.f32 %v578, 0.0
        %v667 = vmax.f32 %v583, 0.0
        %v668 = vmax.f32 %v586, 0.0
        %v669 = vmax.f32 %v591, 0.0
        %v670 = vmax.f32 %v594, 0.0
        %v671 = vmax.f32 %v599, 0.0
        %v672 = vmax.f32 %v602, 0.0
        %v673 = vmax.f32 %v607, 0.0
        %v674 = vmax.f32 %v610, 0.0
        %v675 = vmax.f32 %v615, 0.0
        %v676 = vmax.f32 %v618, 0.0
        %v677 = vmax.f32 %v623, 0.0
        %v678 = vmax.f32 %v626, 0.0
        %v679 = vmax.f32 %v631, 0.0
        %v680 = vmax.f32 %v634, 0.0
        %v681 = vmax.f32 %v639, 0.0
        %v682 = vmax.f32 %v642, 0.0
        %v683 = vmax.f32 %v647, 0.0
        %v684 = vmax.f32 %v650, 0.0
        %v685 = vpack.c.bf16 %v654, %v653
        %v686 = vpack.c.bf16 %v656, %v655
        %v687 = vpack.c.bf16 %v658, %v657
        %v688 = vpack.c.bf16 %v660, %v659
        %v689 = vpack.c.bf16 %v662, %v661
        %v690 = vpack.c.bf16 %v664, %v663
        %v691 = vpack.c.bf16 %v666, %v665
        %v692 = vpack.c.bf16 %v668, %v667
        %v693 = vpack.c.bf16 %v670, %v669
        %v694 = vpack.c.bf16 %v672, %v671
        %v695 = vpack.c.bf16 %v674, %v673
        %v696 = vpack.c.bf16 %v676, %v675
        %v697 = vpack.c.bf16 %v678, %v677
        %v698 = vpack.c.bf16 %v680, %v679
        %v699 = vpack.c.bf16 %v682, %v681
        %v700 = vpack.c.bf16 %v684, %v683
        %v701 = vld [vmem:[#allocation7] sm:$0xf]
        %v702 = vld [vmem:[#allocation7 + $0x4] sm:$0xf]
        %v703 = vld [vmem:[#allocation7 + $0x8] sm:$0xf]
        %v704 = vld [vmem:[#allocation7 + $0xc] sm:$0xf]
        %v705 = vld [vmem:[#allocation7 + $0x10] sm:$0xf]
        %v706 = vld [vmem:[#allocation7 + $0x14] sm:$0xf]
        %v707 = vld [vmem:[#allocation7 + $0x18] sm:$0xf]
        %v708 = vld [vmem:[#allocation7 + $0x1c] sm:$0xf]
        %v709 = vld [vmem:[#allocation7 + $0x20] sm:$0xf]
        %v710 = vld [vmem:[#allocation7 + $0x24] sm:$0xf]
        %v711 = vld [vmem:[#allocation7 + $0x28] sm:$0xf]
        %v712 = vld [vmem:[#allocation7 + $0x2c] sm:$0xf]
        %v713 = vld [vmem:[#allocation7 + $0x30] sm:$0xf]
        %v714 = vld [vmem:[#allocation7 + $0x34] sm:$0xf]
        %v715 = vld [vmem:[#allocation7 + $0x38] sm:$0xf]
        %v716 = vld [vmem:[#allocation7 + $0x3c] sm:$0xf]
        %v717 = vld [vmem:[%s4] sm:$0x1]
        %v719 = vlaneseq
        %v720 = vshrl.u32 %v719, 7
        %v721 = vsub.s32 0, %v720
        %v722 = vrot.slane %v717, %v721
        %v740 = vunpack.c.l.b16 %v701
        %v741 = vunpack.c.l.b16 %v702
        %v742 = vunpack.c.l.b16 %v703
        %v743 = vunpack.c.l.b16 %v704
        %v744 = vunpack.c.l.b16 %v705
        %v745 = vunpack.c.l.b16 %v706
        %v746 = vunpack.c.l.b16 %v707
        %v747 = vunpack.c.l.b16 %v708
        %v748 = vunpack.c.l.b16 %v709
        %v749 = vunpack.c.l.b16 %v710
        %v750 = vunpack.c.l.b16 %v711
        %v751 = vunpack.c.l.b16 %v712
        %v752 = vunpack.c.l.b16 %v713
        %v753 = vunpack.c.l.b16 %v714
        %v754 = vunpack.c.l.b16 %v715
        %v755 = vunpack.c.l.b16 %v716
        %v756 = vpack.c.b16 %v741, %v740
        %v757 = vpack.c.b16 %v743, %v742
        %v758 = vpack.c.b16 %v745, %v744
        %v759 = vpack.c.b16 %v747, %v746
        %v760 = vpack.c.b16 %v749, %v748
        %v761 = vpack.c.b16 %v751, %v750
        %v762 = vpack.c.b16 %v753, %v752
        %v763 = vpack.c.b16 %v755, %v754
        %772 = vmatprep.subr.bf16.mxu0 0
        %773 = vmatpush1.bf16.msra.mxu0 %v756
        %774 = vmatprep.subr.bf16.mxu0 0
        %775 = vmatpush1.bf16.msra.mxu0 %v757
        %776 = vmatprep.subr.bf16.mxu0 0
        %777 = vmatpush1.bf16.msra.mxu0 %v758
        %778 = vmatprep.subr.bf16.mxu0 0
        %779 = vmatpush1.bf16.msra.mxu0 %v759
        %780 = vmatprep.subr.bf16.mxu0 0
        %781 = vmatpush1.bf16.msra.mxu0 %v760
        %782 = vmatprep.subr.bf16.mxu0 0
        %783 = vmatpush1.bf16.msra.mxu0 %v761
        %784 = vmatprep.subr.bf16.mxu0 0
        %785 = vmatpush1.bf16.msra.mxu0 %v762
        %786 = vmatprep.subr.bf16.mxu0 0
        %787 = vmatpush1.bf16.msra.mxu0 %v763
        %788 = vmatprep.subr.bf16.mxu0 0
        %789 = vmatpush1.bf16.msra.mxu0 0
        %790 = vmatprep.subr.bf16.mxu0 0
        %791 = vmatpush1.bf16.msra.mxu0 0
        %792 = vmatprep.subr.bf16.mxu0 0
        %793 = vmatpush1.bf16.msra.mxu0 0
        %794 = vmatprep.subr.bf16.mxu0 0
        %795 = vmatpush1.bf16.msra.mxu0 0
        %796 = vmatprep.subr.bf16.mxu0 0
        %797 = vmatpush1.bf16.msra.mxu0 0
        %798 = vmatprep.subr.bf16.mxu0 0
        %799 = vmatpush1.bf16.msra.mxu0 0
        %800 = vmatprep.subr.bf16.mxu0 0
        %801 = vmatpush1.bf16.msra.mxu0 0
        %802 = vmatprep.subr.bf16.mxu0 0
        %803 = vmatpush1.bf16.msra.mxu0 0
        %804 = vmatprep.mubr.bf16.mxu0 0
        %805 = vmatmul.mubr.bf16.gmra.mrb[0].mxu0 %v685
        %v806 = vpop.f32.mrb[0].mxu0
        %v807 = vadd.f32 %v722, %v806
        %v808 = vpop.f32.mrb[0].mxu0
        %v809 = vpop.f32.mrb[0].mxu0
        %v810 = vadd.f32 %v722, %v809
        %v811 = vpop.f32.mrb[0].mxu0
        %812 = vmatprep.mubr.bf16.mxu0 0
        %813 = vmatmul.mubr.bf16.gmra.mrb[0].mxu0 %v686
        %v814 = vpop.f32.mrb[0].mxu0
        %v815 = vadd.f32 %v722, %v814
        %v816 = vpop.f32.mrb[0].mxu0
        %v817 = vpop.f32.mrb[0].mxu0
        %v818 = vadd.f32 %v722, %v817
        %v819 = vpop.f32.mrb[0].mxu0
        %820 = vmatprep.mubr.bf16.mxu0 0
        %821 = vmatmul.mubr.bf16.gmra.mrb[0].mxu0 %v687
        %v822 = vpop.f32.mrb[0].mxu0
        %v823 = vadd.f32 %v722, %v822
        %v824 = vpop.f32.mrb[0].mxu0
        %v825 = vpop.f32.mrb[0].mxu0
        %v826 = vadd.f32 %v722, %v825
        %v827 = vpop.f32.mrb[0].mxu0
        %828 = vmatprep.mubr.bf16.mxu0 0
        %829 = vmatmul.mubr.bf16.gmra.mrb[0].mxu0 %v688
        %v830 = vpop.f32.mrb[0].mxu0
        %v831 = vadd.f32 %v722, %v830
        %v832 = vpop.f32.mrb[0].mxu0
        %v833 = vpop.f32.mrb[0].mxu0
        %v834 = vadd.f32 %v722, %v833
        %v835 = vpop.f32.mrb[0].mxu0
        %836 = vmatprep.mubr.bf16.mxu0 0
        %837 = vmatmul.mubr.bf16.gmra.mrb[0].mxu0 %v689
        %v838 = vpop.f32.mrb[0].mxu0
        %v839 = vadd.f32 %v722, %v838
        %v840 = vpop.f32.mrb[0].mxu0
        %v841 = vpop.f32.mrb[0].mxu0
        %v842 = vadd.f32 %v722, %v841
        %v843 = vpop.f32.mrb[0].mxu0
        %844 = vmatprep.mubr.bf16.mxu0 0
        %845 = vmatmul.mubr.bf16.gmra.mrb[0].mxu0 %v690
        %v846 = vpop.f32.mrb[0].mxu0
        %v847 = vadd.f32 %v722, %v846
        %v848 = vpop.f32.mrb[0].mxu0
        %v849 = vpop.f32.mrb[0].mxu0
        %v850 = vadd.f32 %v722, %v849
        %v851 = vpop.f32.mrb[0].mxu0
        %852 = vmatprep.mubr.bf16.mxu0 0
        %853 = vmatmul.mubr.bf16.gmra.mrb[0].mxu0 %v691
        %v854 = vpop.f32.mrb[0].mxu0
        %v855 = vadd.f32 %v722, %v854
        %v856 = vpop.f32.mrb[0].mxu0
        %v857 = vpop.f32.mrb[0].mxu0
        %v858 = vadd.f32 %v722, %v857
        %v859 = vpop.f32.mrb[0].mxu0
        %860 = vmatprep.mubr.bf16.mxu0 0
        %861 = vmatmul.mubr.bf16.gmra.mrb[0].mxu0 %v692
        %v862 = vpop.f32.mrb[0].mxu0
        %v863 = vadd.f32 %v722, %v862
        %v864 = vpop.f32.mrb[0].mxu0
        %v865 = vpop.f32.mrb[0].mxu0
        %v866 = vadd.f32 %v722, %v865
        %v867 = vpop.f32.mrb[0].mxu0
        %868 = vmatprep.mubr.bf16.mxu0 0
        %869 = vmatmul.mubr.bf16.gmra.mrb[0].mxu0 %v693
        %v870 = vpop.f32.mrb[0].mxu0
        %v871 = vadd.f32 %v722, %v870
        %v872 = vpop.f32.mrb[0].mxu0
        %v873 = vpop.f32.mrb[0].mxu0
        %v874 = vadd.f32 %v722, %v873
        %v875 = vpop.f32.mrb[0].mxu0
        %876 = vmatprep.mubr.bf16.mxu0 0
        %877 = vmatmul.mubr.bf16.gmra.mrb[0].mxu0 %v694
        %v878 = vpop.f32.mrb[0].mxu0
        %v879 = vadd.f32 %v722, %v878
        %v880 = vpop.f32.mrb[0].mxu0
        %v881 = vpop.f32.mrb[0].mxu0
        %v882 = vadd.f32 %v722, %v881
        %v883 = vpop.f32.mrb[0].mxu0
        %884 = vmatprep.mubr.bf16.mxu0 0
        %885 = vmatmul.mubr.bf16.gmra.mrb[0].mxu0 %v695
        %v886 = vpop.f32.mrb[0].mxu0
        %v887 = vadd.f32 %v722, %v886
        %v888 = vpop.f32.mrb[0].mxu0
        %v889 = vpop.f32.mrb[0].mxu0
        %v890 = vadd.f32 %v722, %v889
        %v891 = vpop.f32.mrb[0].mxu0
        %892 = vmatprep.mubr.bf16.mxu0 0
        %893 = vmatmul.mubr.bf16.gmra.mrb[0].mxu0 %v696
        %v894 = vpop.f32.mrb[0].mxu0
        %v895 = vadd.f32 %v722, %v894
        %v896 = vpop.f32.mrb[0].mxu0
        %v897 = vpop.f32.mrb[0].mxu0
        %v898 = vadd.f32 %v722, %v897
        %v899 = vpop.f32.mrb[0].mxu0
        %900 = vmatprep.mubr.bf16.mxu0 0
        %901 = vmatmul.mubr.bf16.gmra.mrb[0].mxu0 %v697
        %v902 = vpop.f32.mrb[0].mxu0
        %v903 = vadd.f32 %v722, %v902
        %v904 = vpop.f32.mrb[0].mxu0
        %v905 = vpop.f32.mrb[0].mxu0
        %v906 = vadd.f32 %v722, %v905
        %v907 = vpop.f32.mrb[0].mxu0
        %908 = vmatprep.mubr.bf16.mxu0 0
        %909 = vmatmul.mubr.bf16.gmra.mrb[0].mxu0 %v698
        %v910 = vpop.f32.mrb[0].mxu0
        %v911 = vadd.f32 %v722, %v910
        %v912 = vpop.f32.mrb[0].mxu0
        %v913 = vpop.f32.mrb[0].mxu0
        %v914 = vadd.f32 %v722, %v913
        %v915 = vpop.f32.mrb[0].mxu0
        %916 = vmatprep.mubr.bf16.mxu0 0
        %917 = vmatmul.mubr.bf16.gmra.mrb[0].mxu0 %v699
        %v918 = vpop.f32.mrb[0].mxu0
        %v919 = vadd.f32 %v722, %v918
        %v920 = vpop.f32.mrb[0].mxu0
        %v921 = vpop.f32.mrb[0].mxu0
        %v922 = vadd.f32 %v722, %v921
        %v923 = vpop.f32.mrb[0].mxu0
        %924 = vmatprep.mubr.bf16.mxu0 0
        %925 = vmatmul.mubr.bf16.gmra.mrb[0].mxu0 %v700
        %v926 = vpop.f32.mrb[0].mxu0
        %v927 = vadd.f32 %v722, %v926
        %v928 = vpop.f32.mrb[0].mxu0
        %v929 = vpop.f32.mrb[0].mxu0
        %v930 = vadd.f32 %v722, %v929
        %v931 = vpop.f32.mrb[0].mxu0
        %932 = vdwg.mxu0
        %v933 = vpack.c.bf16 %v810, %v807
        %v934 = vpack.c.bf16 %v818, %v815
        %v935 = vpack.c.bf16 %v826, %v823
        %v936 = vpack.c.bf16 %v834, %v831
        %v937 = vpack.c.bf16 %v842, %v839
        %v938 = vpack.c.bf16 %v850, %v847
        %v939 = vpack.c.bf16 %v858, %v855
        %v940 = vpack.c.bf16 %v866, %v863
        %v941 = vpack.c.bf16 %v874, %v871
        %v942 = vpack.c.bf16 %v882, %v879
        %v943 = vpack.c.bf16 %v890, %v887
        %v944 = vpack.c.bf16 %v898, %v895
        %v945 = vpack.c.bf16 %v906, %v903
        %v946 = vpack.c.bf16 %v914, %v911
        %v947 = vpack.c.bf16 %v922, %v919
        %v948 = vpack.c.bf16 %v930, %v927
        %v965 = vunpack.c.l.b16 %v933
        %v966 = vunpack.c.h.b16 %v933
        %v967 = vunpack.c.l.b16 %v934
        %v968 = vunpack.c.h.b16 %v934
        %v969 = vunpack.c.l.b16 %v935
        %v970 = vunpack.c.h.b16 %v935
        %v971 = vunpack.c.l.b16 %v936
        %v972 = vunpack.c.h.b16 %v936
        %v973 = vunpack.c.l.b16 %v937
        %v974 = vunpack.c.h.b16 %v937
        %v975 = vunpack.c.l.b16 %v938
        %v976 = vunpack.c.h.b16 %v938
        %v977 = vunpack.c.l.b16 %v939
        %v978 = vunpack.c.h.b16 %v939
        %v979 = vunpack.c.l.b16 %v940
        %v980 = vunpack.c.h.b16 %v940
        %v981 = vunpack.c.l.b16 %v941
        %v982 = vunpack.c.h.b16 %v941
        %v983 = vunpack.c.l.b16 %v942
        %v984 = vunpack.c.h.b16 %v942
        %v985 = vunpack.c.l.b16 %v943
        %v986 = vunpack.c.h.b16 %v943
        %v987 = vunpack.c.l.b16 %v944
        %v988 = vunpack.c.h.b16 %v944
        %v989 = vunpack.c.l.b16 %v945
        %v990 = vunpack.c.h.b16 %v945
        %v991 = vunpack.c.l.b16 %v946
        %v992 = vunpack.c.h.b16 %v946
        %v993 = vunpack.c.l.b16 %v947
        %v994 = vunpack.c.h.b16 %v947
        %v995 = vunpack.c.l.b16 %v948
        %v996 = vunpack.c.h.b16 %v948
        %v997 = vpack.c.b16 %v965, %v965
        %v998 = vpack.c.b16 %v966, %v966
        %v999 = vpack.c.b16 %v967, %v967
        %v1000 = vpack.c.b16 %v968, %v968
        %v1001 = vpack.c.b16 %v969, %v969
        %v1002 = vpack.c.b16 %v970, %v970
        %v1003 = vpack.c.b16 %v971, %v971
        %v1004 = vpack.c.b16 %v972, %v972
        %v1005 = vpack.c.b16 %v973, %v973
        %v1006 = vpack.c.b16 %v974, %v974
        %v1007 = vpack.c.b16 %v975, %v975
        %v1008 = vpack.c.b16 %v976, %v976
        %v1009 = vpack.c.b16 %v977, %v977
        %v1010 = vpack.c.b16 %v978, %v978
        %v1011 = vpack.c.b16 %v979, %v979
        %v1012 = vpack.c.b16 %v980, %v980
        %v1013 = vpack.c.b16 %v981, %v981
        %v1014 = vpack.c.b16 %v982, %v982
        %v1015 = vpack.c.b16 %v983, %v983
        %v1016 = vpack.c.b16 %v984, %v984
        %v1017 = vpack.c.b16 %v985, %v985
        %v1018 = vpack.c.b16 %v986, %v986
        %v1019 = vpack.c.b16 %v987, %v987
        %v1020 = vpack.c.b16 %v988, %v988
        %v1021 = vpack.c.b16 %v989, %v989
        %v1022 = vpack.c.b16 %v990, %v990
        %v1023 = vpack.c.b16 %v991, %v991
        %v1024 = vpack.c.b16 %v992, %v992
        %v1025 = vpack.c.b16 %v993, %v993
        %v1026 = vpack.c.b16 %v994, %v994
        %v1027 = vpack.c.b16 %v995, %v995
        %v1028 = vpack.c.b16 %v996, %v996
        %1061 = vst [vmem:[%s289] sm:$0xf] %v997
        %1062 = vst [vmem:[%s289 + $0x4] sm:$0xf] %v998
        %1063 = vst [vmem:[%s289 + $0x8] sm:$0xf] %v999
        %1064 = vst [vmem:[%s289 + $0xc] sm:$0xf] %v1000
        %1065 = vst [vmem:[%s289 + $0x10] sm:$0xf] %v1001
        %1066 = vst [vmem:[%s289 + $0x14] sm:$0xf] %v1002
        %1067 = vst [vmem:[%s289 + $0x18] sm:$0xf] %v1003
        %1068 = vst [vmem:[%s289 + $0x1c] sm:$0xf] %v1004
        %1069 = vst [vmem:[%s289 + $0x20] sm:$0xf] %v1005
        %1070 = vst [vmem:[%s289 + $0x24] sm:$0xf] %v1006
        %1071 = vst [vmem:[%s289 + $0x28] sm:$0xf] %v1007
        %1072 = vst [vmem:[%s289 + $0x2c] sm:$0xf] %v1008
        %1073 = vst [vmem:[%s289 + $0x30] sm:$0xf] %v1009
        %1074 = vst [vmem:[%s289 + $0x34] sm:$0xf] %v1010
        %1075 = vst [vmem:[%s289 + $0x38] sm:$0xf] %v1011
        %1076 = vst [vmem:[%s289 + $0x3c] sm:$0xf] %v1012
        %1077 = vst [vmem:[%s289 + $0x40] sm:$0xf] %v1013
        %1078 = vst [vmem:[%s289 + $0x44] sm:$0xf] %v1014
        %1079 = vst [vmem:[%s289 + $0x48] sm:$0xf] %v1015
        %1080 = vst [vmem:[%s289 + $0x4c] sm:$0xf] %v1016
        %1081 = vst [vmem:[%s289 + $0x50] sm:$0xf] %v1017
        %1082 = vst [vmem:[%s289 + $0x54] sm:$0xf] %v1018
        %1083 = vst [vmem:[%s289 + $0x58] sm:$0xf] %v1019
        %1084 = vst [vmem:[%s289 + $0x5c] sm:$0xf] %v1020
        %1085 = vst [vmem:[%s289 + $0x60] sm:$0xf] %v1021
        %1086 = vst [vmem:[%s289 + $0x64] sm:$0xf] %v1022
        %1087 = vst [vmem:[%s289 + $0x68] sm:$0xf] %v1023
        %1088 = vst [vmem:[%s289 + $0x6c] sm:$0xf] %v1024
        %1089 = vst [vmem:[%s289 + $0x70] sm:$0xf] %v1025
        %1090 = vst [vmem:[%s289 + $0x74] sm:$0xf] %v1026
        %1091 = vst [vmem:[%s289 + $0x78] sm:$0xf] %v1027
        %1092 = vst [vmem:[%s289 + $0x7c] sm:$0xf] %v1028
        %s1093 = sand.u32 %s157, 1
        %s1094 = scalar_lea.sflag [#allocation4], %s1093
        %s1095 = sand.u32 %s157, 1
        %s1096 = smul.addr %s1095, 128
        %s1097 = scalar_lea.vmem [#allocation8], %s1096
        // Predicated region
        $region53: #{tpu_custom_call.1} parent=39 // pred_check
          %p1098 = pneg %p167
        $region54: #{tpu_custom_call.1} parent=39 // pred_check_branch
          %1100 = sbr.rel (%p1098) target = $region56
        $region55: #{tpu_custom_call.1} parent=39 // pred_region
          %s1101 = smul.u32 32, %s28
          %s1103 = ssub.s32 2048, 2048
          %1104 = vsyncadd %s1094, %s1103
          %s1105 = smul.addr %s27, 32
          %s1106 = sadd.s32 %s1101, %s1105
          %s1107 = smul.addr %s1106, 64
          %s1108 = scalar_lea.hbm %s5, %s1107
          %s1109 = sshll.u32 %s1097, 4
          %s1110 = int_to_ptr.vmem [resolvable:$true] %s1109
          %1115 = dma.vmem_to_hbm [thread:$0]  %s1110, 2048, %s1108, %s1094, 64, 64, 4
        $region56: #{tpu_custom_call.1} parent=39 // pred_fallthru
          _
      $region40: #{tpu_custom_call.1} parent=5 // pred_fallthru
        _
      %p1116 = scmp.le.s32.totalorder 2, %s18
      // Predicated region
      $region57: #{tpu_custom_call.1} parent=5 // pred_check
        %p1117 = pneg %p1116
      $region58: #{tpu_custom_call.1} parent=5 // pred_check_branch
        %1119 = sbr.rel (%p1117) target = $region60
      $region59: #{tpu_custom_call.1} parent=5 // pred_region
        %s1120 = ssub.s32 %s18, 2
        // Predicated region
        $region61: #{tpu_custom_call.1} parent=59 // pred_check
          %p1121 = pneg %p173
        $region62: #{tpu_custom_call.1} parent=59 // pred_check_branch
          %1123 = sbr.rel (%p1121) target = $region64
        $region63: #{tpu_custom_call.1} parent=59 // pred_region
          %s1124 = sand.u32 %s158, 1
          %s1125 = scalar_lea.sflag [#allocation4], %s1124
          %s1126 = sand.u32 %s158, 1
          %s1127 = smul.addr %s1126, 128
          %s1128 = scalar_lea.vmem [#allocation8], %s1127
          %1129 = dma.done %s1125, 2048
        $region64: #{tpu_custom_call.1} parent=59 // pred_fallthru
          _
      $region60: #{tpu_custom_call.1} parent=5 // pred_fallthru
        _
    $region6: #{tpu_custom_call.1} parent=1 // loop_footer
      %s22 = sadd.s32 1, %s18
    $region7: #{tpu_custom_call.1} parent=1 // loop_footer_branch
      %17 = sbr.rel target = $region3
    $region8: #{tpu_custom_call.1} parent=1 // loop_exit
      _
    %1130 = vsyncpa [#allocation3], 1
    %s1131 = scalar_lea.sflag [#allocation3], 1
    %1132 = vsyncpa %s1131, 1
    %1133 = vsyncpa [#allocation6], 1
    %1134 = vsyncpa [#allocation4], 1
    %s1135 = scalar_lea.sflag [#allocation4], 1
    %1136 = vsyncpa %s1135, 1

// kernel: tpu_custom_call.1
$region0: #{tpu_custom_call.1}
  #allocation0 [shape = 'u32[]', space=smem, size = 0x4, offset = 0x4, fixed_abs, tag = 'smem constant byte address 0x4 - core index']
  #allocation1 [shape = 'u32[144,128]{1,0:T(1,128)}', space=vmem, size = 0x12000, scoped, tag = 'internal scratch']
  %s0 = inlined_call_operand.hbm [shape: bf16[2,256,128], index: 0, kind: input, shape index: {}]
  %s1 = inlined_call_operand.hbm [shape: bf16[128,128], index: 1, kind: input, shape index: {}]
  %s2 = inlined_call_operand.vmem [shape: f32[1,128], index: 2, kind: input, shape index: {}]
  %s3 = inlined_call_operand.hbm [shape: bf16[128,128], index: 3, kind: input, shape index: {}]
  %s4 = inlined_call_operand.vmem [shape: f32[1,128], index: 4, kind: input, shape index: {}]
  %s5 = inlined_call_operand.hbm [shape: bf16[2,256,128], index: 5, kind: output, shape index: {}]
  %s6 = sld [smem:[#allocation0]]
  $region65: #{tpu_custom_call.1} parent=0
    _
  %s8 = ssub.s32 1, %s6
  %s9 = scalar_select 0, %s8, %s6
  $region1: #{tpu_custom_call.1} parent=0
    #allocation2 [shape = 'u8[131072]{0}', space=vmem, size = 0x20000, scoped, tag = 'input window, operand 0']
    #allocation3 [shape = 's32[2]{0}', space=sflag, size = 0x8, scoped, tag = 'scoped memory for tpu_custom_call.1']
    #allocation4 [shape = 's32[2]{0}', space=sflag, size = 0x8, scoped, tag = 'scoped memory for tpu_custom_call.1']
    #allocation5 [shape = 'u8[32768]{0}', space=vmem, size = 0x8000, scoped, tag = 'input window, operand 1, single buffered']
    #allocation6 [shape = 's32[1]{0}', space=sflag, size = 0x4, scoped, tag = 'scoped memory for tpu_custom_call.1']
    #allocation7 [shape = 'u8[32768]{0}', space=vmem, size = 0x8000, scoped, tag = 'input window, operand 3, single buffered']
    #allocation8 [shape = 'u8[131072]{0}', space=vmem, size = 0x20000, scoped, tag = 'output window, operand 0']
    %10 = vsyncpa [#allocation3], 0
    %s11 = scalar_lea.sflag [#allocation3], 1
    %12 = vsyncpa %s11, 0
    %13 = vsyncpa [#allocation6], 0
    %14 = vsyncpa [#allocation4], 0
    %s15 = scalar_lea.sflag [#allocation4], 1
    %16 = vsyncpa %s15, 0
    loop: start=0, step=1, limit=4
    $region2: #{tpu_custom_call.1} parent=1 // loop_pre_header
      _
    $region3: #{tpu_custom_call.1} parent=1 // loop_header
      %s18 = sphi 0, %s22
      %p19 = scmp.ge.s32.totalorder %s18, 4
      %s25 = sphi 0, %s37
      %s26 = sphi 0, %s33
      %s27 = sphi 0, %s25
      %s28 = sphi 0, %s26
      %s29 = sphi 0, %s27
      %s30 = sphi 0, %s28
      %s42 = sphi 0, %s44
      %s45 = sphi 0, %s42
      %s46 = sphi 0, %s45
      %s62 = sphi 0, %s46
      %s66 = sphi 0, %s66
      %s68 = sphi 0, %s66
      %s69 = sphi 0, %s68
      %s83 = sphi 0, %s69
      %s87 = sphi 0, %s87
      %s89 = sphi 0, %s87
      %s90 = sphi 0, %s89
      %s104 = sphi 0, %s90
      %s108 = sphi 0, %s108
      %s110 = sphi 0, %s108
      %s111 = sphi 0, %s110
      %s125 = sphi 0, %s111
      %s129 = sphi 0, %s129
      %s131 = sphi 0, %s129
      %s132 = sphi 0, %s131
      %s146 = sphi 0, %s132
      %s154 = sphi 0, %s156
      %s157 = sphi 0, %s154
      %s158 = sphi 0, %s157
      %s174 = sphi 0, %s158
    $region4: #{tpu_custom_call.1} parent=1 // loop_header_branch
      %21 = sbr.rel (%p19) target = $region8
    $region5: #{tpu_custom_call.1} parent=1 // loop_body
      %s23 = ssub.s32 %s18, 1
      %s24 = ssub.s32 %s18, 2
      %s31 = sadd.s32 1, %s26
      %p32 = scmp.ge.s32.totalorder %s31, 1
      %s33 = scalar_select %p32, 0, %s31
      %s34 = sadd.s32 1, %s25
      %s35 = scalar_select %p32, %s34, %s25
      %p36 = scmp.ge.s32.totalorder %s35, 2
      %s37 = scalar_select %p36, 0, %s35
      %s38 = ssub.s32 %s25, %s37
      %s39 = ssub.s32 %s26, %s33
      %s40 = sor.u32 %s38, %s39
      %p41 = scmp.eq.s32.totalorder %s40, 0
      %s43 = sadd.s32 %s42, 1
      %s44 = scalar_select %p41, %s42, %s43
      %p47 = pneg %p41
      %p48 = scmp.eq.s32.totalorder %s18, 1
      %p49 = por %p47, %p48
      %p50 = scmp.ne.s32.totalorder %s42, %s45
      %p51 = scmp.eq.s32.totalorder %s18, 0
      %p52 = por %p50, %p51
      %p53 = scmp.ne.s32.totalorder %s42, %s45
      %p54 = scmp.eq.s32.totalorder %s23, 1
      %p55 = por %p53, %p54
      %p56 = scmp.ne.s32.totalorder %s45, %s46
      %p57 = scmp.eq.s32.totalorder %s23, 0
      %p58 = por %p56, %p57
      %p59 = scmp.ne.s32.totalorder %s45, %s46
      %p60 = scmp.eq.s32.totalorder %s24, 1
      %p61 = por %p59, %p60
      %p63 = scmp.ne.s32.totalorder %s46, %s62
      %p64 = scmp.eq.s32.totalorder %s24, 0
      %p65 = por %p63, %p64
      %s67 = sadd.s32 %s66, 1
      %p70 = scmp.eq.s32.totalorder %s18, 1
      %p71 = scmp.ne.s32.totalorder %s66, %s68
      %p72 = scmp.eq.s32.totalorder %s18, 0
      %p73 = por %p71, %p72
      %p74 = scmp.ne.s32.totalorder %s66, %s68
      %p75 = scmp.eq.s32.totalorder %s23, 1
      %p76 = por %p74, %p75
      %p77 = scmp.ne.s32.totalorder %s68, %s69
      %p78 = scmp.eq.s32.totalorder %s23, 0
      %p79 = por %p77, %p78
      %p80 = scmp.ne.s32.totalorder %s68, %s69
      %p81 = scmp.eq.s32.totalorder %s24, 1
      %p82 = por %p80, %p81
      %p84 = scmp.ne.s32.totalorder %s69, %s83
      %p85 = scmp.eq.s32.totalorder %s24, 0
      %p86 = por %p84, %p85
      %s88 = sadd.s32 %s87, 1
      %p91 = scmp.eq.s32.totalorder %s18, 1
      %p92 = scmp.ne.s32.totalorder %s87, %s89
      %p93 = scmp.eq.s32.totalorder %s18, 0
      %p94 = por %p92, %p93
      %p95 = scmp.ne.s32.totalorder %s87, %s89
      %p96 = scmp.eq.s32.totalorder %s23, 1
      %p97 = por %p95, %p96
      %p98 = scmp.ne.s32.totalorder %s89, %s90
      %p99 = scmp.eq.s32.totalorder %s23, 0
      %p100 = por %p98, %p99
      %p101 = scmp.ne.s32.totalorder %s89, %s90
      %p102 = scmp.eq.s32.totalorder %s24, 1
      %p103 = por %p101, %p102
      %p105 = scmp.ne.s32.totalorder %s90, %s104
      %p106 = scmp.eq.s32.totalorder %s24, 0
      %p107 = por %p105, %p106
      %s109 = sadd.s32 %s108, 1
      %p112 = scmp.eq.s32.totalorder %s18, 1
      %p113 = scmp.ne.s32.totalorder %s108, %s110
      %p114 = scmp.eq.s32.totalorder %s18, 0
      %p115 = por %p113, %p114
      %p116 = scmp.ne.s32.totalorder %s108, %s110
      %p117 = scmp.eq.s32.totalorder %s23, 1
      %p118 = por %p116, %p117
      %p119 = scmp.ne.s32.totalorder %s110, %s111
      %p120 = scmp.eq.s32.totalorder %s23, 0
      %p121 = por %p119, %p120
      %p122 = scmp.ne.s32.totalorder %s110, %s111
      %p123 = scmp.eq.s32.totalorder %s24, 1
      %p124 = por %p122, %p123
      %p126 = scmp.ne.s32.totalorder %s111, %s125
      %p127 = scmp.eq.s32.totalorder %s24, 0
      %p128 = por %p126, %p127
      %s130 = sadd.s32 %s129, 1
      %p133 = scmp.eq.s32.totalorder %s18, 1
      %p134 = scmp.ne.s32.totalorder %s129, %s131
      %p135 = scmp.eq.s32.totalorder %s18, 0
      %p136 = por %p134, %p135
      %p137 = scmp.ne.s32.totalorder %s129, %s131
      %p138 = scmp.eq.s32.totalorder %s23, 1
      %p139 = por %p137, %p138
      %p140 = scmp.ne.s32.totalorder %s131, %s132
      %p141 = scmp.eq.s32.totalorder %s23, 0
      %p142 = por %p140, %p141
      %p143 = scmp.ne.s32.totalorder %s131, %s132
      %p144 = scmp.eq.s32.totalorder %s24, 1
      %p145 = por %p143, %p144
      %p147 = scmp.ne.s32.totalorder %s132, %s146
      %p148 = scmp.eq.s32.totalorder %s24, 0
      %p149 = por %p147, %p148
      %s150 = ssub.s32 %s25, %s37
      %s151 = ssub.s32 %s26, %s33
      %s152 = sor.u32 %s150, %s151
      %p153 = scmp.eq.s32.totalorder %s152, 0
      %s155 = sadd.s32 %s154, 1
      %s156 = scalar_select %p153, %s154, %s155
      %p159 = pneg %p153
      %p160 = scmp.eq.s32.totalorder %s18, 1
      %p161 = por %p159, %p160
      %p162 = scmp.ne.s32.totalorder %s154, %s157
      %p163 = scmp.eq.s32.totalorder %s18, 0
      %p164 = por %p162, %p163
      %p165 = scmp.ne.s32.totalorder %s154, %s157
      %p166 = scmp.eq.s32.totalorder %s23, 1
      %p167 = por %p165, %p166
      %p168 = scmp.ne.s32.totalorder %s157, %s158
      %p169 = scmp.eq.s32.totalorder %s23, 0
      %p170 = por %p168, %p169
      %p171 = scmp.ne.s32.totalorder %s157, %s158
      %p172 = scmp.eq.s32.totalorder %s24, 1
      %p173 = por %p171, %p172
      %p175 = scmp.ne.s32.totalorder %s158, %s174
      %p176 = scmp.eq.s32.totalorder %s24, 0
      %p177 = por %p175, %p176
      %p178 = scmp.le.s32.totalorder 1, %s18
      %p179 = scmp.lt.s32.totalorder %s18, 3
      %p180 = pnand %p178, %p179
      %p181 = pneg %p180
      // Predicated region
      $region9: #{tpu_custom_call.1} parent=5 // pred_check
        _
      $region10: #{tpu_custom_call.1} parent=5 // pred_check_branch
        %183 = sbr.rel (%p180) target = $region12
      $region11: #{tpu_custom_call.1} parent=5 // pred_region
        %s184 = ssub.s32 %s18, 1
        // Predicated region
        $region13: #{tpu_custom_call.1} parent=11 // pred_check
          %p185 = pneg %p79
        $region14: #{tpu_custom_call.1} parent=11 // pred_check_branch
          %187 = sbr.rel (%p185) target = $region16
        $region15: #{tpu_custom_call.1} parent=11 // pred_region
          %s189 = ssub.s32 1024, 1024
          %190 = vsyncadd [#allocation6], %s189
          %s191 = sshll.u32 [#allocation5], 4
          %s192 = int_to_ptr.vmem [resolvable:$true] %s191
          %197 = dma.hbm_to_vmem [thread:$0]  %s1, 1024, %s192, [#allocation6], 64, 64, 4
        $region16: #{tpu_custom_call.1} parent=11 // pred_fallthru
          _
        // Predicated region
        $region17: #{tpu_custom_call.1} parent=11 // pred_check
          %p198 = pneg %p100
        $region18: #{tpu_custom_call.1} parent=11 // pred_check_branch
          %200 = sbr.rel (%p198) target = $region20
        $region19: #{tpu_custom_call.1} parent=11 // pred_region
          _
        $region20: #{tpu_custom_call.1} parent=11 // pred_fallthru
          _
        // Predicated region
        $region21: #{tpu_custom_call.1} parent=11 // pred_check
          %p201 = pneg %p121
        $region22: #{tpu_custom_call.1} parent=11 // pred_check_branch
          %203 = sbr.rel (%p201) target = $region24
        $region23: #{tpu_custom_call.1} parent=11 // pred_region
          %s205 = ssub.s32 1024, 1024
          %206 = vsyncadd [#allocation6], %s205
          %s207 = sshll.u32 [#allocation7], 4
          %s208 = int_to_ptr.vmem [resolvable:$true] %s207
          %213 = dma.hbm_to_vmem [thread:$0]  %s3, 1024, %s208, [#allocation6], 64, 64, 4
        $region24: #{tpu_custom_call.1} parent=11 // pred_fallthru
          _
        // Predicated region
        $region25: #{tpu_custom_call.1} parent=11 // pred_check
          %p214 = pneg %p142
        $region26: #{tpu_custom_call.1} parent=11 // pred_check_branch
          %216 = sbr.rel (%p214) target = $region28
        $region27: #{tpu_custom_call.1} parent=11 // pred_region
          _
        $region28: #{tpu_custom_call.1} parent=11 // pred_fallthru
          _
      $region12: #{tpu_custom_call.1} parent=5 // pred_fallthru
        _
      %p217 = scmp.lt.s32.totalorder %s18, 2
      // Predicated region
      $region29: #{tpu_custom_call.1} parent=5 // pred_check
        %p218 = pneg %p217
      $region30: #{tpu_custom_call.1} parent=5 // pred_check_branch
        %220 = sbr.rel (%p218) target = $region32
      $region31: #{tpu_custom_call.1} parent=5 // pred_region
        // Predicated region
        $region33: #{tpu_custom_call.1} parent=31 // pred_check
          %p221 = pneg %p52
        $region34: #{tpu_custom_call.1} parent=31 // pred_check_branch
          %223 = sbr.rel (%p221) target = $region36
        $region35: #{tpu_custom_call.1} parent=31 // pred_region
          %s224 = sand.u32 %s42, 1
          %s225 = scalar_lea.sflag [#allocation3], %s224
          %s226 = sand.u32 %s42, 1
          %s227 = smul.addr %s226, 128
          %s228 = scalar_lea.vmem [#allocation2], %s227
          %s229 = smul.u32 32, %s26
          %s231 = ssub.s32 2048, 2048
          %232 = vsyncadd %s225, %s231
          %s233 = smul.addr %s25, 32
          %s234 = sadd.s32 %s229, %s233
          %s235 = smul.addr %s234, 64
          %s236 = scalar_lea.hbm %s0, %s235
          %s237 = sshll.u32 %s228, 4
          %s238 = int_to_ptr.vmem [resolvable:$true] %s237
          %243 = dma.hbm_to_vmem [thread:$0]  %s236, 2048, %s238, %s225, 64, 64, 4
        $region36: #{tpu_custom_call.1} parent=31 // pred_fallthru
          _
      $region32: #{tpu_custom_call.1} parent=5 // pred_fallthru
        _
      %p244 = scmp.le.s32.totalorder 1, %s18
      %p245 = scmp.lt.s32.totalorder %s18, 3
      %p246 = pnand %p244, %p245
      %p247 = pneg %p246
      // Predicated region
      $region37: #{tpu_custom_call.1} parent=5 // pred_check
        _
      $region38: #{tpu_custom_call.1} parent=5 // pred_check_branch
        %249 = sbr.rel (%p246) target = $region40
      $region39: #{tpu_custom_call.1} parent=5 // pred_region
        %s250 = ssub.s32 %s18, 1
        %s251 = sand.u32 %s45, 1
        %s252 = scalar_lea.sflag [#allocation3], %s251
        %s253 = sand.u32 %s45, 1
        %s254 = smul.addr %s253, 128
        %s255 = scalar_lea.vmem [#allocation2], %s254
        // Predicated region
        $region41: #{tpu_custom_call.1} parent=39 // pred_check
          %p256 = pneg %p58
        $region42: #{tpu_custom_call.1} parent=39 // pred_check_branch
          %258 = sbr.rel (%p256) target = $region44
        $region43: #{tpu_custom_call.1} parent=39 // pred_region
          %259 = dma.done %s252, 2048
        $region44: #{tpu_custom_call.1} parent=39 // pred_fallthru
          _
        // Predicated region
        $region45: #{tpu_custom_call.1} parent=39 // pred_check
          %p260 = pneg %p79
        $region46: #{tpu_custom_call.1} parent=39 // pred_check_branch
          %262 = sbr.rel (%p260) target = $region48
        $region47: #{tpu_custom_call.1} parent=39 // pred_region
          %263 = dma.done [#allocation6], 1024
        $region48: #{tpu_custom_call.1} parent=39 // pred_fallthru
          _
        // Predicated region
        $region49: #{tpu_custom_call.1} parent=39 // pred_check
          %p264 = pneg %p121
        $region50: #{tpu_custom_call.1} parent=39 // pred_check_branch
          %266 = sbr.rel (%p264) target = $region52
        $region51: #{tpu_custom_call.1} parent=39 // pred_region
          %267 = dma.done [#allocation6], 1024
        $region52: #{tpu_custom_call.1} parent=39 // pred_fallthru
          _
        %s268 = sand.u32 %s45, 1
        %s269 = scalar_lea.sflag [#allocation3], %s268
        %s270 = sand.u32 %s45, 1
        %s271 = smul.addr %s270, 128
        %s272 = scalar_lea.vmem [#allocation2], %s271
        %p273 = pneg %p58
        %p274 = pneg %p55
        %p275 = pneg %p79
        %p276 = pneg %p76
        %p277 = pneg %p100
        %p278 = pneg %p97
        %p279 = pneg %p121
        %p280 = pneg %p118
        %p281 = pneg %p142
        %p282 = pneg %p139
        %p283 = pneg %p170
        %p284 = pneg %p167
        %s285 = sand.u32 %s157, 1
        %s286 = scalar_lea.sflag [#allocation4], %s285
        %s287 = sand.u32 %s157, 1
        %s288 = smul.addr %s287, 128
        %s289 = scalar_lea.vmem [#allocation8], %s288
        %s290 = smul.u32 32, %s28
        %s291 = smul.u32 32, %s28
        %v293 = vld [vmem:[%s255] sm:$0xf]
        %v294 = vld [vmem:[%s255 + $0x4] sm:$0xf]
        %v295 = vld [vmem:[%s255 + $0x8] sm:$0xf]
        %v296 = vld [vmem:[%s255 + $0xc] sm:$0xf]
        %v297 = vld [vmem:[%s255 + $0x10] sm:$0xf]
        %v298 = vld [vmem:[%s255 + $0x14] sm:$0xf]
        %v299 = vld [vmem:[%s255 + $0x18] sm:$0xf]
        %v300 = vld [vmem:[%s255 + $0x1c] sm:$0xf]
        %v301 = vld [vmem:[%s255 + $0x20] sm:$0xf]
        %v302 = vld [vmem:[%s255 + $0x24] sm:$0xf]
        %v303 = vld [vmem:[%s255 + $0x28] sm:$0xf]
        %v304 = vld [vmem:[%s255 + $0x2c] sm:$0xf]
        %v305 = vld [vmem:[%s255 + $0x30] sm:$0xf]
        %v306 = vld [vmem:[%s255 + $0x34] sm:$0xf]
        %v307 = vld [vmem:[%s255 + $0x38] sm:$0xf]
        %v308 = vld [vmem:[%s255 + $0x3c] sm:$0xf]
        %v309 = vld [vmem:[%s255 + $0x40] sm:$0xf]
        %v310 = vld [vmem:[%s255 + $0x44] sm:$0xf]
        %v311 = vld [vmem:[%s255 + $0x48] sm:$0xf]
        %v312 = vld [vmem:[%s255 + $0x4c] sm:$0xf]
        %v313 = vld [vmem:[%s255 + $0x50] sm:$0xf]
        %v314 = vld [vmem:[%s255 + $0x54] sm:$0xf]
        %v315 = vld [vmem:[%s255 + $0x58] sm:$0xf]
        %v316 = vld [vmem:[%s255 + $0x5c] sm:$0xf]
        %v317 = vld [vmem:[%s255 + $0x60] sm:$0xf]
        %v318 = vld [vmem:[%s255 + $0x64] sm:$0xf]
        %v319 = vld [vmem:[%s255 + $0x68] sm:$0xf]
        %v320 = vld [vmem:[%s255 + $0x6c] sm:$0xf]
        %v321 = vld [vmem:[%s255 + $0x70] sm:$0xf]
        %v322 = vld [vmem:[%s255 + $0x74] sm:$0xf]
        %v323 = vld [vmem:[%s255 + $0x78] sm:$0xf]
        %v324 = vld [vmem:[%s255 + $0x7c] sm:$0xf]
        %v325 = vld [vmem:[#allocation5] sm:$0xf]
        %v326 = vld [vmem:[#allocation5 + $0x4] sm:$0xf]
        %v327 = vld [vmem:[#allocation5 + $0x8] sm:$0xf]
        %v328 = vld [vmem:[#allocation5 + $0xc] sm:$0xf]
        %v329 = vld [vmem:[#allocation5 + $0x10] sm:$0xf]
        %v330 = vld [vmem:[#allocation5 + $0x14] sm:$0xf]
        %v331 = vld [vmem:[#allocation5 + $0x18] sm:$0xf]
        %v332 = vld [vmem:[#allocation5 + $0x1c] sm:$0xf]
        %v333 = vld [vmem:[#allocation5 + $0x20] sm:$0xf]
        %v334 = vld [vmem:[#allocation5 + $0x24] sm:$0xf]
        %v335 = vld [vmem:[#allocation5 + $0x28] sm:$0xf]
        %v336 = vld [vmem:[#allocation5 + $0x2c] sm:$0xf]
        %v337 = vld [vmem:[#allocation5 + $0x30] sm:$0xf]
        %v338 = vld [vmem:[#allocation5 + $0x34] sm:$0xf]
        %v339 = vld [vmem:[#allocation5 + $0x38] sm:$0xf]
        %v340 = vld [vmem:[#allocation5 + $0x3c] sm:$0xf]
        %v341 = vld [vmem:[%s2] sm:$0x1]
        %v343 = vlaneseq
        %v344 = vshrl.u32 %v343, 7
        %v345 = vsub.s32 0, %v344
        %v346 = vrot.slane %v341, %v345
        %v380 = vunpack.c.l.b16 %v293
        %v381 = vunpack.c.l.b16 %v294
        %v382 = vunpack.c.l.b16 %v295
        %v383 = vunpack.c.l.b16 %v296
        %v384 = vunpack.c.l.b16 %v297
        %v385 = vunpack.c.l.b16 %v298
        %v386 = vunpack.c.l.b16 %v299
        %v387 = vunpack.c.l.b16 %v300
        %v388 = vunpack.c.l.b16 %v301
        %v389 = vunpack.c.l.b16 %v302
        %v390 = vunpack.c.l.b16 %v303
        %v391 = vunpack.c.l.b16 %v304
        %v392 = vunpack.c.l.b16 %v305
        %v393 = vunpack.c.l.b16 %v306
        %v394 = vunpack.c.l.b16 %v307
        %v395 = vunpack.c.l.b16 %v308
        %v396 = vunpack.c.l.b16 %v309
        %v397 = vunpack.c.l.b16 %v310
        %v398 = vunpack.c.l.b16 %v311
        %v399 = vunpack.c.l.b16 %v312
        %v400 = vunpack.c.l.b16 %v313
        %v401 = vunpack.c.l.b16 %v314
        %v402 = vunpack.c.l.b16 %v315
        %v403 = vunpack.c.l.b16 %v316
        %v404 = vunpack.c.l.b16 %v317
        %v405 = vunpack.c.l.b16 %v318
        %v406 = vunpack.c.l.b16 %v319
        %v407 = vunpack.c.l.b16 %v320
        %v408 = vunpack.c.l.b16 %v321
        %v409 = vunpack.c.l.b16 %v322
        %v410 = vunpack.c.l.b16 %v323
        %v411 = vunpack.c.l.b16 %v324
        %v412 = vpack.c.b16 %v381, %v380
        %v413 = vpack.c.b16 %v383, %v382
        %v414 = vpack.c.b16 %v385, %v384
        %v415 = vpack.c.b16 %v387, %v386
        %v416 = vpack.c.b16 %v389, %v388
        %v417 = vpack.c.b16 %v391, %v390
        %v418 = vpack.c.b16 %v393, %v392
        %v419 = vpack.c.b16 %v395, %v394
        %v420 = vpack.c.b16 %v397, %v396
        %v421 = vpack.c.b16 %v399, %v398
        %v422 = vpack.c.b16 %v401, %v400
        %v423 = vpack.c.b16 %v403, %v402
        %v424 = vpack.c.b16 %v405, %v404
        %v425 = vpack.c.b16 %v407, %v406
        %v426 = vpack.c.b16 %v409, %v408
        %v427 = vpack.c.b16 %v411, %v410
        %v460 = vunpack.c.l.b16 %v325
        %v461 = vunpack.c.l.b16 %v326
        %v462 = vunpack.c.l.b16 %v327
        %v463 = vunpack.c.l.b16 %v328
        %v464 = vunpack.c.l.b16 %v329
        %v465 = vunpack.c.l.b16 %v330
        %v466 = vunpack.c.l.b16 %v331
        %v467 = vunpack.c.l.b16 %v332
        %v468 = vunpack.c.l.b16 %v333
        %v469 = vunpack.c.l.b16 %v334
        %v470 = vunpack.c.l.b16 %v335
        %v471 = vunpack.c.l.b16 %v336
        %v472 = vunpack.c.l.b16 %v337
        %v473 = vunpack.c.l.b16 %v338
        %v474 = vunpack.c.l.b16 %v339
        %v475 = vunpack.c.l.b16 %v340
        %v476 = vpack.c.b16 %v461, %v460
        %v477 = vpack.c.b16 %v463, %v462
        %v478 = vpack.c.b16 %v465, %v464
        %v479 = vpack.c.b16 %v467, %v466
        %v480 = vpack.c.b16 %v469, %v468
        %v481 = vpack.c.b16 %v471, %v470
        %v482 = vpack.c.b16 %v473, %v472
        %v483 = vpack.c.b16 %v475, %v474
        %492 = vmatprep.subr.bf16.mxu0 0
        %493 = vmatpush1.bf16.msra.mxu0 %v476
        %494 = vmatprep.subr.bf16.mxu0 0
        %495 = vmatpush1.bf16.msra.mxu0 %v477
        %496 = vmatprep.subr.bf16.mxu0 0
        %497 = vmatpush1.bf16.msra.mxu0 %v478
        %498 = vmatprep.subr.bf16.mxu0 0
        %499 = vmatpush1.bf16.msra.mxu0 %v479
        %500 = vmatprep.subr.bf16.mxu0 0
        %501 = vmatpush1.bf16.msra.mxu0 %v480
        %502 = vmatprep.subr.bf16.mxu0 0
        %503 = vmatpush1.bf16.msra.mxu0 %v481
        %504 = vmatprep.subr.bf16.mxu0 0
        %505 = vmatpush1.bf16.msra.mxu0 %v482
        %506 = vmatprep.subr.bf16.mxu0 0
        %507 = vmatpush1.bf16.msra.mxu0 %v483
        %508 = vmatprep.subr.bf16.mxu0 0
        %509 = vmatpush1.bf16.msra.mxu0 0
        %510 = vmatprep.subr.bf16.mxu0 0
        %511 = vmatpush1.bf16.msra.mxu0 0
        %512 = vmatprep.subr.bf16.mxu0 0
        %513 = vmatpush1.bf16.msra.mxu0 0
        %514 = vmatprep.subr.bf16.mxu0 0
        %515 = vmatpush1.bf16.msra.mxu0 0
        %516 = vmatprep.subr.bf16.mxu0 0
        %517 = vmatpush1.bf16.msra.mxu0 0
        %518 = vmatprep.subr.bf16.mxu0 0
        %519 = vmatpush1.bf16.msra.mxu0 0
        %520 = vmatprep.subr.bf16.mxu0 0
        %521 = vmatpush1.bf16.msra.mxu0 0
        %522 = vmatprep.subr.bf16.mxu0 0
        %523 = vmatpush1.bf16.msra.mxu0 0
        %524 = vmatprep.mubr.bf16.mxu0 0
        %525 = vmatmul.mubr.bf16.gmra.mrb[0].mxu0 %v412
        %v526 = vpop.f32.mrb[0].mxu0
        %v527 = vadd.f32 %v346, %v526
        %v528 = vpop.f32.mrb[0].mxu0
        %v529 = vpop.f32.mrb[0].mxu0
        %v530 = vadd.f32 %v346, %v529
        %v531 = vpop.f32.mrb[0].mxu0
        %532 = vmatprep.mubr.bf16.mxu0 0
        %533 = vmatmul.mubr.bf16.gmra.mrb[0].mxu0 %v413
        %v534 = vpop.f32.mrb[0].mxu0
        %v535 = vadd.f32 %v346, %v534
        %v536 = vpop.f32.mrb[0].mxu0
        %v537 = vpop.f32.mrb[0].mxu0
        %v538 = vadd.f32 %v346, %v537
        %v539 = vpop.f32.mrb[0].mxu0
        %540 = vmatprep.mubr.bf16.mxu0 0
        %541 = vmatmul.mubr.bf16.gmra.mrb[0].mxu0 %v414
        %v542 = vpop.f32.mrb[0].mxu0
        %v543 = vadd.f32 %v346, %v542
        %v544 = vpop.f32.mrb[0].mxu0
        %v545 = vpop.f32.mrb[0].mxu0
        %v546 = vadd.f32 %v346, %v545
        %v547 = vpop.f32.mrb[0].mxu0
        %548 = vmatprep.mubr.bf16.mxu0 0
        %549 = vmatmul.mubr.bf16.gmra.mrb[0].mxu0 %v415
        %v550 = vpop.f32.mrb[0].mxu0
        %v551 = vadd.f32 %v346, %v550
        %v552 = vpop.f32.mrb[0].mxu0
        %v553 = vpop.f32.mrb[0].mxu0
        %v554 = vadd.f32 %v346, %v553
        %v555 = vpop.f32.mrb[0].mxu0
        %556 = vmatprep.mubr.bf16.mxu0 0
        %557 = vmatmul.mubr.bf16.gmra.mrb[0].mxu0 %v416
        %v558 = vpop.f32.mrb[0].mxu0
        %v559 = vadd.f32 %v346, %v558
        %v560 = vpop.f32.mrb[0].mxu0
        %v561 = vpop.f32.mrb[0].mxu0
        %v562 = vadd.f32 %v346, %v561
        %v563 = vpop.f32.mrb[0].mxu0
        %564 = vmatprep.mubr.bf16.mxu0 0
        %565 = vmatmul.mubr.bf16.gmra.mrb[0].mxu0 %v417
        %v566 = vpop.f32.mrb[0].mxu0
        %v567 = vadd.f32 %v346, %v566
        %v568 = vpop.f32.mrb[0].mxu0
        %v569 = vpop.f32.mrb[0].mxu0
        %v570 = vadd.f32 %v346, %v569
        %v571 = vpop.f32.mrb[0].mxu0
        %572 = vmatprep.mubr.bf16.mxu0 0
        %573 = vmatmul.mubr.bf16.gmra.mrb[0].mxu0 %v418
        %v574 = vpop.f32.mrb[0].mxu0
        %v575 = vadd.f32 %v346, %v574
        %v576 = vpop.f32.mrb[0].mxu0
        %v577 = vpop.f32.mrb[0].mxu0
        %v578 = vadd.f32 %v346, %v577
        %v579 = vpop.f32.mrb[0].mxu0
        %580 = vmatprep.mubr.bf16.mxu0 0
        %581 = vmatmul.mubr.bf16.gmra.mrb[0].mxu0 %v419
        %v582 = vpop.f32.mrb[0].mxu0
        %v583 = vadd.f32 %v346, %v582
        %v584 = vpop.f32.mrb[0].mxu0
        %v585 = vpop.f32.mrb[0].mxu0
        %v586 = vadd.f32 %v346, %v585
        %v587 = vpop.f32.mrb[0].mxu0
        %588 = vmatprep.mubr.bf16.mxu0 0
        %589 = vmatmul.mubr.bf16.gmra.mrb[0].mxu0 %v420
        %v590 = vpop.f32.mrb[0].mxu0
        %v591 = vadd.f32 %v346, %v590
        %v592 = vpop.f32.mrb[0].mxu0
        %v593 = vpop.f32.mrb[0].mxu0
        %v594 = vadd.f32 %v346, %v593
        %v595 = vpop.f32.mrb[0].mxu0
        %596 = vmatprep.mubr.bf16.mxu0 0
        %597 = vmatmul.mubr.bf16.gmra.mrb[0].mxu0 %v421
        %v598 = vpop.f32.mrb[0].mxu0
        %v599 = vadd.f32 %v346, %v598
        %v600 = vpop.f32.mrb[0].mxu0
        %v601 = vpop.f32.mrb[0].mxu0
        %v602 = vadd.f32 %v346, %v601
        %v603 = vpop.f32.mrb[0].mxu0
        %604 = vmatprep.mubr.bf16.mxu0 0
        %605 = vmatmul.mubr.bf16.gmra.mrb[0].mxu0 %v422
        %v606 = vpop.f32.mrb[0].mxu0
        %v607 = vadd.f32 %v346, %v606
        %v608 = vpop.f32.mrb[0].mxu0
        %v609 = vpop.f32.mrb[0].mxu0
        %v610 = vadd.f32 %v346, %v609
        %v611 = vpop.f32.mrb[0].mxu0
        %612 = vmatprep.mubr.bf16.mxu0 0
        %613 = vmatmul.mubr.bf16.gmra.mrb[0].mxu0 %v423
        %v614 = vpop.f32.mrb[0].mxu0
        %v615 = vadd.f32 %v346, %v614
        %v616 = vpop.f32.mrb[0].mxu0
        %v617 = vpop.f32.mrb[0].mxu0
        %v618 = vadd.f32 %v346, %v617
        %v619 = vpop.f32.mrb[0].mxu0
        %620 = vmatprep.mubr.bf16.mxu0 0
        %621 = vmatmul.mubr.bf16.gmra.mrb[0].mxu0 %v424
        %v622 = vpop.f32.mrb[0].mxu0
        %v623 = vadd.f32 %v346, %v622
        %v624 = vpop.f32.mrb[0].mxu0
        %v625 = vpop.f32.mrb[0].mxu0
        %v626 = vadd.f32 %v346, %v625
        %v627 = vpop.f32.mrb[0].mxu0
        %628 = vmatprep.mubr.bf16.mxu0 0
        %629 = vmatmul.mubr.bf16.gmra.mrb[0].mxu0 %v425
        %v630 = vpop.f32.mrb[0].mxu0
        %v631 = vadd.f32 %v346, %v630
        %v632 = vpop.f32.mrb[0].mxu0
        %v633 = vpop.f32.mrb[0].mxu0
        %v634 = vadd.f32 %v346, %v633
        %v635 = vpop.f32.mrb[0].mxu0
        %636 = vmatprep.mubr.bf16.mxu0 0
        %637 = vmatmul.mubr.bf16.gmra.mrb[0].mxu0 %v426
        %v638 = vpop.f32.mrb[0].mxu0
        %v639 = vadd.f32 %v346, %v638
        %v640 = vpop.f32.mrb[0].mxu0
        %v641 = vpop.f32.mrb[0].mxu0
        %v642 = vadd.f32 %v346, %v641
        %v643 = vpop.f32.mrb[0].mxu0
        %644 = vmatprep.mubr.bf16.mxu0 0
        %645 = vmatmul.mubr.bf16.gmra.mrb[0].mxu0 %v427
        %v646 = vpop.f32.mrb[0].mxu0
        %v647 = vadd.f32 %v346, %v646
        %v648 = vpop.f32.mrb[0].mxu0
        %v649 = vpop.f32.mrb[0].mxu0
        %v650 = vadd.f32 %v346, %v649
        %v651 = vpop.f32.mrb[0].mxu0
        %652 = vdwg.mxu0
        %v653 = vmax.f32 %v527, 0.0
        %v654 = vmax.f32 %v530, 0.0
        %v655 = vmax.f32 %v535, 0.0
        %v656 = vmax.f32 %v538, 0.0
        %v657 = vmax.f32 %v543, 0.0
        %v658 = vmax.f32 %v546, 0.0
        %v659 = vmax.f32 %v551, 0.0
        %v660 = vmax.f32 %v554, 0.0
        %v661 = vmax.f32 %v559, 0.0
        %v662 = vmax.f32 %v562, 0.0
        %v663 = vmax.f32 %v567, 0.0
        %v664 = vmax.f32 %v570, 0.0
        %v665 = vmax.f32 %v575, 0.0
        %v666 = vmax.f32 %v578, 0.0
        %v667 = vmax.f32 %v583, 0.0
        %v668 = vmax.f32 %v586, 0.0
        %v669 = vmax.f32 %v591, 0.0
        %v670 = vmax.f32 %v594, 0.0
        %v671 = vmax.f32 %v599, 0.0
        %v672 = vmax.f32 %v602, 0.0
        %v673 = vmax.f32 %v607, 0.0
        %v674 = vmax.f32 %v610, 0.0
        %v675 = vmax.f32 %v615, 0.0
        %v676 = vmax.f32 %v618, 0.0
        %v677 = vmax.f32 %v623, 0.0
        %v678 = vmax.f32 %v626, 0.0
        %v679 = vmax.f32 %v631, 0.0
        %v680 = vmax.f32 %v634, 0.0
        %v681 = vmax.f32 %v639, 0.0
        %v682 = vmax.f32 %v642, 0.0
        %v683 = vmax.f32 %v647, 0.0
        %v684 = vmax.f32 %v650, 0.0
        %v685 = vpack.c.bf16 %v654, %v653
        %v686 = vpack.c.bf16 %v656, %v655
        %v687 = vpack.c.bf16 %v658, %v657
        %v688 = vpack.c.bf16 %v660, %v659
        %v689 = vpack.c.bf16 %v662, %v661
        %v690 = vpack.c.bf16 %v664, %v663
        %v691 = vpack.c.bf16 %v666, %v665
        %v692 = vpack.c.bf16 %v668, %v667
        %v693 = vpack.c.bf16 %v670, %v669
        %v694 = vpack.c.bf16 %v672, %v671
        %v695 = vpack.c.bf16 %v674, %v673
        %v696 = vpack.c.bf16 %v676, %v675
        %v697 = vpack.c.bf16 %v678, %v677
        %v698 = vpack.c.bf16 %v680, %v679
        %v699 = vpack.c.bf16 %v682, %v681
        %v700 = vpack.c.bf16 %v684, %v683
        %v701 = vld [vmem:[#allocation7] sm:$0xf]
        %v702 = vld [vmem:[#allocation7 + $0x4] sm:$0xf]
        %v703 = vld [vmem:[#allocation7 + $0x8] sm:$0xf]
        %v704 = vld [vmem:[#allocation7 + $0xc] sm:$0xf]
        %v705 = vld [vmem:[#allocation7 + $0x10] sm:$0xf]
        %v706 = vld [vmem:[#allocation7 + $0x14] sm:$0xf]
        %v707 = vld [vmem:[#allocation7 + $0x18] sm:$0xf]
        %v708 = vld [vmem:[#allocation7 + $0x1c] sm:$0xf]
        %v709 = vld [vmem:[#allocation7 + $0x20] sm:$0xf]
        %v710 = vld [vmem:[#allocation7 + $0x24] sm:$0xf]
        %v711 = vld [vmem:[#allocation7 + $0x28] sm:$0xf]
        %v712 = vld [vmem:[#allocation7 + $0x2c] sm:$0xf]
        %v713 = vld [vmem:[#allocation7 + $0x30] sm:$0xf]
        %v714 = vld [vmem:[#allocation7 + $0x34] sm:$0xf]
        %v715 = vld [vmem:[#allocation7 + $0x38] sm:$0xf]
        %v716 = vld [vmem:[#allocation7 + $0x3c] sm:$0xf]
        %v717 = vld [vmem:[%s4] sm:$0x1]
        %v719 = vlaneseq
        %v720 = vshrl.u32 %v719, 7
        %v721 = vsub.s32 0, %v720
        %v722 = vrot.slane %v717, %v721
        %v740 = vunpack.c.l.b16 %v701
        %v741 = vunpack.c.l.b16 %v702
        %v742 = vunpack.c.l.b16 %v703
        %v743 = vunpack.c.l.b16 %v704
        %v744 = vunpack.c.l.b16 %v705
        %v745 = vunpack.c.l.b16 %v706
        %v746 = vunpack.c.l.b16 %v707
        %v747 = vunpack.c.l.b16 %v708
        %v748 = vunpack.c.l.b16 %v709
        %v749 = vunpack.c.l.b16 %v710
        %v750 = vunpack.c.l.b16 %v711
        %v751 = vunpack.c.l.b16 %v712
        %v752 = vunpack.c.l.b16 %v713
        %v753 = vunpack.c.l.b16 %v714
        %v754 = vunpack.c.l.b16 %v715
        %v755 = vunpack.c.l.b16 %v716
        %v756 = vpack.c.b16 %v741, %v740
        %v757 = vpack.c.b16 %v743, %v742
        %v758 = vpack.c.b16 %v745, %v744
        %v759 = vpack.c.b16 %v747, %v746
        %v760 = vpack.c.b16 %v749, %v748
        %v761 = vpack.c.b16 %v751, %v750
        %v762 = vpack.c.b16 %v753, %v752
        %v763 = vpack.c.b16 %v755, %v754
        %772 = vmatprep.subr.bf16.mxu0 0
        %773 = vmatpush1.bf16.msra.mxu0 %v756
        %774 = vmatprep.subr.bf16.mxu0 0
        %775 = vmatpush1.bf16.msra.mxu0 %v757
        %776 = vmatprep.subr.bf16.mxu0 0
        %777 = vmatpush1.bf16.msra.mxu0 %v758
        %778 = vmatprep.subr.bf16.mxu0 0
        %779 = vmatpush1.bf16.msra.mxu0 %v759
        %780 = vmatprep.subr.bf16.mxu0 0
        %781 = vmatpush1.bf16.msra.mxu0 %v760
        %782 = vmatprep.subr.bf16.mxu0 0
        %783 = vmatpush1.bf16.msra.mxu0 %v761
        %784 = vmatprep.subr.bf16.mxu0 0
        %785 = vmatpush1.bf16.msra.mxu0 %v762
        %786 = vmatprep.subr.bf16.mxu0 0
        %787 = vmatpush1.bf16.msra.mxu0 %v763
        %788 = vmatprep.subr.bf16.mxu0 0
        %789 = vmatpush1.bf16.msra.mxu0 0
        %790 = vmatprep.subr.bf16.mxu0 0
        %791 = vmatpush1.bf16.msra.mxu0 0
        %792 = vmatprep.subr.bf16.mxu0 0
        %793 = vmatpush1.bf16.msra.mxu0 0
        %794 = vmatprep.subr.bf16.mxu0 0
        %795 = vmatpush1.bf16.msra.mxu0 0
        %796 = vmatprep.subr.bf16.mxu0 0
        %797 = vmatpush1.bf16.msra.mxu0 0
        %798 = vmatprep.subr.bf16.mxu0 0
        %799 = vmatpush1.bf16.msra.mxu0 0
        %800 = vmatprep.subr.bf16.mxu0 0
        %801 = vmatpush1.bf16.msra.mxu0 0
        %802 = vmatprep.subr.bf16.mxu0 0
        %803 = vmatpush1.bf16.msra.mxu0 0
        %804 = vmatprep.mubr.bf16.mxu0 0
        %805 = vmatmul.mubr.bf16.gmra.mrb[0].mxu0 %v685
        %v806 = vpop.f32.mrb[0].mxu0
        %v807 = vadd.f32 %v722, %v806
        %v808 = vpop.f32.mrb[0].mxu0
        %v809 = vpop.f32.mrb[0].mxu0
        %v810 = vadd.f32 %v722, %v809
        %v811 = vpop.f32.mrb[0].mxu0
        %812 = vmatprep.mubr.bf16.mxu0 0
        %813 = vmatmul.mubr.bf16.gmra.mrb[0].mxu0 %v686
        %v814 = vpop.f32.mrb[0].mxu0
        %v815 = vadd.f32 %v722, %v814
        %v816 = vpop.f32.mrb[0].mxu0
        %v817 = vpop.f32.mrb[0].mxu0
        %v818 = vadd.f32 %v722, %v817
        %v819 = vpop.f32.mrb[0].mxu0
        %820 = vmatprep.mubr.bf16.mxu0 0
        %821 = vmatmul.mubr.bf16.gmra.mrb[0].mxu0 %v687
        %v822 = vpop.f32.mrb[0].mxu0
        %v823 = vadd.f32 %v722, %v822
        %v824 = vpop.f32.mrb[0].mxu0
        %v825 = vpop.f32.mrb[0].mxu0
        %v826 = vadd.f32 %v722, %v825
        %v827 = vpop.f32.mrb[0].mxu0
        %828 = vmatprep.mubr.bf16.mxu0 0
        %829 = vmatmul.mubr.bf16.gmra.mrb[0].mxu0 %v688
        %v830 = vpop.f32.mrb[0].mxu0
        %v831 = vadd.f32 %v722, %v830
        %v832 = vpop.f32.mrb[0].mxu0
        %v833 = vpop.f32.mrb[0].mxu0
        %v834 = vadd.f32 %v722, %v833
        %v835 = vpop.f32.mrb[0].mxu0
        %836 = vmatprep.mubr.bf16.mxu0 0
        %837 = vmatmul.mubr.bf16.gmra.mrb[0].mxu0 %v689
        %v838 = vpop.f32.mrb[0].mxu0
        %v839 = vadd.f32 %v722, %v838
        %v840 = vpop.f32.mrb[0].mxu0
        %v841 = vpop.f32.mrb[0].mxu0
        %v842 = vadd.f32 %v722, %v841
        %v843 = vpop.f32.mrb[0].mxu0
        %844 = vmatprep.mubr.bf16.mxu0 0
        %845 = vmatmul.mubr.bf16.gmra.mrb[0].mxu0 %v690
        %v846 = vpop.f32.mrb[0].mxu0
        %v847 = vadd.f32 %v722, %v846
        %v848 = vpop.f32.mrb[0].mxu0
        %v849 = vpop.f32.mrb[0].mxu0
        %v850 = vadd.f32 %v722, %v849
        %v851 = vpop.f32.mrb[0].mxu0
        %852 = vmatprep.mubr.bf16.mxu0 0
        %853 = vmatmul.mubr.bf16.gmra.mrb[0].mxu0 %v691
        %v854 = vpop.f32.mrb[0].mxu0
        %v855 = vadd.f32 %v722, %v854
        %v856 = vpop.f32.mrb[0].mxu0
        %v857 = vpop.f32.mrb[0].mxu0
        %v858 = vadd.f32 %v722, %v857
        %v859 = vpop.f32.mrb[0].mxu0
        %860 = vmatprep.mubr.bf16.mxu0 0
        %861 = vmatmul.mubr.bf16.gmra.mrb[0].mxu0 %v692
        %v862 = vpop.f32.mrb[0].mxu0
        %v863 = vadd.f32 %v722, %v862
        %v864 = vpop.f32.mrb[0].mxu0
        %v865 = vpop.f32.mrb[0].mxu0
        %v866 = vadd.f32 %v722, %v865
        %v867 = vpop.f32.mrb[0].mxu0
        %868 = vmatprep.mubr.bf16.mxu0 0
        %869 = vmatmul.mubr.bf16.gmra.mrb[0].mxu0 %v693
        %v870 = vpop.f32.mrb[0].mxu0
        %v871 = vadd.f32 %v722, %v870
        %v872 = vpop.f32.mrb[0].mxu0
        %v873 = vpop.f32.mrb[0].mxu0
        %v874 = vadd.f32 %v722, %v873
        %v875 = vpop.f32.mrb[0].mxu0
        %876 = vmatprep.mubr.bf16.mxu0 0
        %877 = vmatmul.mubr.bf16.gmra.mrb[0].mxu0 %v694
        %v878 = vpop.f32.mrb[0].mxu0
        %v879 = vadd.f32 %v722, %v878
        %v880 = vpop.f32.mrb[0].mxu0
        %v881 = vpop.f32.mrb[0].mxu0
        %v882 = vadd.f32 %v722, %v881
        %v883 = vpop.f32.mrb[0].mxu0
        %884 = vmatprep.mubr.bf16.mxu0 0
        %885 = vmatmul.mubr.bf16.gmra.mrb[0].mxu0 %v695
        %v886 = vpop.f32.mrb[0].mxu0
        %v887 = vadd.f32 %v722, %v886
        %v888 = vpop.f32.mrb[0].mxu0
        %v889 = vpop.f32.mrb[0].mxu0
        %v890 = vadd.f32 %v722, %v889
        %v891 = vpop.f32.mrb[0].mxu0
        %892 = vmatprep.mubr.bf16.mxu0 0
        %893 = vmatmul.mubr.bf16.gmra.mrb[0].mxu0 %v696
        %v894 = vpop.f32.mrb[0].mxu0
        %v895 = vadd.f32 %v722, %v894
        %v896 = vpop.f32.mrb[0].mxu0
        %v897 = vpop.f32.mrb[0].mxu0
        %v898 = vadd.f32 %v722, %v897
        %v899 = vpop.f32.mrb[0].mxu0
        %900 = vmatprep.mubr.bf16.mxu0 0
        %901 = vmatmul.mubr.bf16.gmra.mrb[0].mxu0 %v697
        %v902 = vpop.f32.mrb[0].mxu0
        %v903 = vadd.f32 %v722, %v902
        %v904 = vpop.f32.mrb[0].mxu0
        %v905 = vpop.f32.mrb[0].mxu0
        %v906 = vadd.f32 %v722, %v905
        %v907 = vpop.f32.mrb[0].mxu0
        %908 = vmatprep.mubr.bf16.mxu0 0
        %909 = vmatmul.mubr.bf16.gmra.mrb[0].mxu0 %v698
        %v910 = vpop.f32.mrb[0].mxu0
        %v911 = vadd.f32 %v722, %v910
        %v912 = vpop.f32.mrb[0].mxu0
        %v913 = vpop.f32.mrb[0].mxu0
        %v914 = vadd.f32 %v722, %v913
        %v915 = vpop.f32.mrb[0].mxu0
        %916 = vmatprep.mubr.bf16.mxu0 0
        %917 = vmatmul.mubr.bf16.gmra.mrb[0].mxu0 %v699
        %v918 = vpop.f32.mrb[0].mxu0
        %v919 = vadd.f32 %v722, %v918
        %v920 = vpop.f32.mrb[0].mxu0
        %v921 = vpop.f32.mrb[0].mxu0
        %v922 = vadd.f32 %v722, %v921
        %v923 = vpop.f32.mrb[0].mxu0
        %924 = vmatprep.mubr.bf16.mxu0 0
        %925 = vmatmul.mubr.bf16.gmra.mrb[0].mxu0 %v700
        %v926 = vpop.f32.mrb[0].mxu0
        %v927 = vadd.f32 %v722, %v926
        %v928 = vpop.f32.mrb[0].mxu0
        %v929 = vpop.f32.mrb[0].mxu0
        %v930 = vadd.f32 %v722, %v929
        %v931 = vpop.f32.mrb[0].mxu0
        %932 = vdwg.mxu0
        %v933 = vpack.c.bf16 %v810, %v807
        %v934 = vpack.c.bf16 %v818, %v815
        %v935 = vpack.c.bf16 %v826, %v823
        %v936 = vpack.c.bf16 %v834, %v831
        %v937 = vpack.c.bf16 %v842, %v839
        %v938 = vpack.c.bf16 %v850, %v847
        %v939 = vpack.c.bf16 %v858, %v855
        %v940 = vpack.c.bf16 %v866, %v863
        %v941 = vpack.c.bf16 %v874, %v871
        %v942 = vpack.c.bf16 %v882, %v879
        %v943 = vpack.c.bf16 %v890, %v887
        %v944 = vpack.c.bf16 %v898, %v895
        %v945 = vpack.c.bf16 %v906, %v903
        %v946 = vpack.c.bf16 %v914, %v911
        %v947 = vpack.c.bf16 %v922, %v919
        %v948 = vpack.c.bf16 %v930, %v927
        %v965 = vunpack.c.l.b16 %v933
        %v966 = vunpack.c.h.b16 %v933
        %v967 = vunpack.c.l.b16 %v934
        %v968 = vunpack.c.h.b16 %v934
        %v969 = vunpack.c.l.b16 %v935
        %v970 = vunpack.c.h.b16 %v935
        %v971 = vunpack.c.l.b16 %v936
        %v972 = vunpack.c.h.b16 %v936
        %v973 = vunpack.c.l.b16 %v937
        %v974 = vunpack.c.h.b16 %v937
        %v975 = vunpack.c.l.b16 %v938
        %v976 = vunpack.c.h.b16 %v938
        %v977 = vunpack.c.l.b16 %v939
        %v978 = vunpack.c.h.b16 %v939
        %v979 = vunpack.c.l.b16 %v940
        %v980 = vunpack.c.h.b16 %v940
        %v981 = vunpack.c.l.b16 %v941
        %v982 = vunpack.c.h.b16 %v941
        %v983 = vunpack.c.l.b16 %v942
        %v984 = vunpack.c.h.b16 %v942
        %v985 = vunpack.c.l.b16 %v943
        %v986 = vunpack.c.h.b16 %v943
        %v987 = vunpack.c.l.b16 %v944
        %v988 = vunpack.c.h.b16 %v944
        %v989 = vunpack.c.l.b16 %v945
        %v990 = vunpack.c.h.b16 %v945
        %v991 = vunpack.c.l.b16 %v946
        %v992 = vunpack.c.h.b16 %v946
        %v993 = vunpack.c.l.b16 %v947
        %v994 = vunpack.c.h.b16 %v947
        %v995 = vunpack.c.l.b16 %v948
        %v996 = vunpack.c.h.b16 %v948
        %v997 = vpack.c.b16 %v965, %v965
        %v998 = vpack.c.b16 %v966, %v966
        %v999 = vpack.c.b16 %v967, %v967
        %v1000 = vpack.c.b16 %v968, %v968
        %v1001 = vpack.c.b16 %v969, %v969
        %v1002 = vpack.c.b16 %v970, %v970
        %v1003 = vpack.c.b16 %v971, %v971
        %v1004 = vpack.c.b16 %v972, %v972
        %v1005 = vpack.c.b16 %v973, %v973
        %v1006 = vpack.c.b16 %v974, %v974
        %v1007 = vpack.c.b16 %v975, %v975
        %v1008 = vpack.c.b16 %v976, %v976
        %v1009 = vpack.c.b16 %v977, %v977
        %v1010 = vpack.c.b16 %v978, %v978
        %v1011 = vpack.c.b16 %v979, %v979
        %v1012 = vpack.c.b16 %v980, %v980
        %v1013 = vpack.c.b16 %v981, %v981
        %v1014 = vpack.c.b16 %v982, %v982
        %v1015 = vpack.c.b16 %v983, %v983
        %v1016 = vpack.c.b16 %v984, %v984
        %v1017 = vpack.c.b16 %v985, %v985
        %v1018 = vpack.c.b16 %v986, %v986
        %v1019 = vpack.c.b16 %v987, %v987
        %v1020 = vpack.c.b16 %v988, %v988
        %v1021 = vpack.c.b16 %v989, %v989
        %v1022 = vpack.c.b16 %v990, %v990
        %v1023 = vpack.c.b16 %v991, %v991
        %v1024 = vpack.c.b16 %v992, %v992
        %v1025 = vpack.c.b16 %v993, %v993
        %v1026 = vpack.c.b16 %v994, %v994
        %v1027 = vpack.c.b16 %v995, %v995
        %v1028 = vpack.c.b16 %v996, %v996
        %1061 = vst [vmem:[%s289] sm:$0xf] %v997
        %1062 = vst [vmem:[%s289 + $0x4] sm:$0xf] %v998
        %1063 = vst [vmem:[%s289 + $0x8] sm:$0xf] %v999
        %1064 = vst [vmem:[%s289 + $0xc] sm:$0xf] %v1000
        %1065 = vst [vmem:[%s289 + $0x10] sm:$0xf] %v1001
        %1066 = vst [vmem:[%s289 + $0x14] sm:$0xf] %v1002
        %1067 = vst [vmem:[%s289 + $0x18] sm:$0xf] %v1003
        %1068 = vst [vmem:[%s289 + $0x1c] sm:$0xf] %v1004
        %1069 = vst [vmem:[%s289 + $0x20] sm:$0xf] %v1005
        %1070 = vst [vmem:[%s289 + $0x24] sm:$0xf] %v1006
        %1071 = vst [vmem:[%s289 + $0x28] sm:$0xf] %v1007
        %1072 = vst [vmem:[%s289 + $0x2c] sm:$0xf] %v1008
        %1073 = vst [vmem:[%s289 + $0x30] sm:$0xf] %v1009
        %1074 = vst [vmem:[%s289 + $0x34] sm:$0xf] %v1010
        %1075 = vst [vmem:[%s289 + $0x38] sm:$0xf] %v1011
        %1076 = vst [vmem:[%s289 + $0x3c] sm:$0xf] %v1012
        %1077 = vst [vmem:[%s289 + $0x40] sm:$0xf] %v1013
        %1078 = vst [vmem:[%s289 + $0x44] sm:$0xf] %v1014
        %1079 = vst [vmem:[%s289 + $0x48] sm:$0xf] %v1015
        %1080 = vst [vmem:[%s289 + $0x4c] sm:$0xf] %v1016
        %1081 = vst [vmem:[%s289 + $0x50] sm:$0xf] %v1017
        %1082 = vst [vmem:[%s289 + $0x54] sm:$0xf] %v1018
        %1083 = vst [vmem:[%s289 + $0x58] sm:$0xf] %v1019
        %1084 = vst [vmem:[%s289 + $0x5c] sm:$0xf] %v1020
        %1085 = vst [vmem:[%s289 + $0x60] sm:$0xf] %v1021
        %1086 = vst [vmem:[%s289 + $0x64] sm:$0xf] %v1022
        %1087 = vst [vmem:[%s289 + $0x68] sm:$0xf] %v1023
        %1088 = vst [vmem:[%s289 + $0x6c] sm:$0xf] %v1024
        %1089 = vst [vmem:[%s289 + $0x70] sm:$0xf] %v1025
        %1090 = vst [vmem:[%s289 + $0x74] sm:$0xf] %v1026
        %1091 = vst [vmem:[%s289 + $0x78] sm:$0xf] %v1027
        %1092 = vst [vmem:[%s289 + $0x7c] sm:$0xf] %v1028
        %s1093 = sand.u32 %s157, 1
        %s1094 = scalar_lea.sflag [#allocation4], %s1093
        %s1095 = sand.u32 %s157, 1
        %s1096 = smul.addr %s1095, 128
        %s1097 = scalar_lea.vmem [#allocation8], %s1096
        // Predicated region
        $region53: #{tpu_custom_call.1} parent=39 // pred_check
          %p1098 = pneg %p167
        $region54: #{tpu_custom_call.1} parent=39 // pred_check_branch
          %1100 = sbr.rel (%p1098) target = $region56
        $region55: #{tpu_custom_call.1} parent=39 // pred_region
          %s1101 = smul.u32 32, %s28
          %s1103 = ssub.s32 2048, 2048
          %1104 = vsyncadd %s1094, %s1103
          %s1105 = smul.addr %s27, 32
          %s1106 = sadd.s32 %s1101, %s1105
          %s1107 = smul.addr %s1106, 64
          %s1108 = scalar_lea.hbm %s5, %s1107
          %s1109 = sshll.u32 %s1097, 4
          %s1110 = int_to_ptr.vmem [resolvable:$true] %s1109
          %1115 = dma.vmem_to_hbm [thread:$0]  %s1110, 2048, %s1108, %s1094, 64, 64, 4
        $region56: #{tpu_custom_call.1} parent=39 // pred_fallthru
          _
      $region40: #{tpu_custom_call.1} parent=5 // pred_fallthru
        _
      %p1116 = scmp.le.s32.totalorder 2, %s18
      // Predicated region
      $region57: #{tpu_custom_call.1} parent=5 // pred_check
        %p1117 = pneg %p1116
      $region58: #{tpu_custom_call.1} parent=5 // pred_check_branch
        %1119 = sbr.rel (%p1117) target = $region60
      $region59: #{tpu_custom_call.1} parent=5 // pred_region
        %s1120 = ssub.s32 %s18, 2
        // Predicated region
        $region61: #{tpu_custom_call.1} parent=59 // pred_check
          %p1121 = pneg %p173
        $region62: #{tpu_custom_call.1} parent=59 // pred_check_branch
          %1123 = sbr.rel (%p1121) target = $region64
        $region63: #{tpu_custom_call.1} parent=59 // pred_region
          %s1124 = sand.u32 %s158, 1
          %s1125 = scalar_lea.sflag [#allocation4], %s1124
          %s1126 = sand.u32 %s158, 1
          %s1127 = smul.addr %s1126, 128
          %s1128 = scalar_lea.vmem [#allocation8], %s1127
          %1129 = dma.done %s1125, 2048
        $region64: #{tpu_custom_call.1} parent=59 // pred_fallthru
          _
      $region60: #{tpu_custom_call.1} parent=5 // pred_fallthru
        _
    $region6: #{tpu_custom_call.1} parent=1 // loop_footer
      %s22 = sadd.s32 1, %s18
    $region7: #{tpu_custom_call.1} parent=1 // loop_footer_branch
      %17 = sbr.rel target = $region3
    $region8: #{tpu_custom_call.1} parent=1 // loop_exit
      _
    %1130 = vsyncpa [#allocation3], 1
    %s1131 = scalar_lea.sflag [#allocation3], 1
    %1132 = vsyncpa %s1131, 1
    %1133 = vsyncpa [#allocation6], 1
    %1134 = vsyncpa [#allocation4], 1
    %s1135 = scalar_lea.sflag [#allocation4], 1
    %1136 = vsyncpa %s1135, 1

</llo_original>
